<compile_context>
chip_gen: v7x
topology: tpu7x:2x2x1
jax: 0.10.0
libtpu: 0.0.40
codegen_flags: <defaults>
</compile_context>

<pallas_src>
import jax
import jax.numpy as jnp
from jax.experimental import pallas as pl
from jax.experimental.pallas import tpu as pltpu

C_FEAT = 256  # the module hard-codes 256-channel features (box_filter 256->256, conv_a 512->256)


# --------------------------------------------------------------------------------------------
# Host-side (XLA) helpers
# --------------------------------------------------------------------------------------------
def pca_scalar(y_guide):
    """PCA_Batch_Feat without the 256x repeat: per-pixel projection of the guide onto its top
    principal direction (k=1, center=True).  Returns (B, H*W) float32."""
    B, Cg, H, W = y_guide.shape
    X = jnp.transpose(y_guide, (0, 2, 3, 1)).reshape(B, H * W, Cg)
    Xc = X - X.mean(axis=1, keepdims=True)                       # center=True
    cov = jnp.einsum('bnc,bnd->bcd', Xc, Xc, precision=jax.lax.Precision.HIGHEST)
    # TODO(synk): torch.pca_lowrank uses randomized SVD; exact jnp.linalg.eigh is used here
    # (principal-component sign is inherently ambiguous either way).
    _, vecs = jnp.linalg.eigh(cov)
    v1 = vecs[..., -1]                                           # (B, Cg) top component
    y = jnp.einsum('bnc,bc->bn', X, v1, precision=jax.lax.Precision.HIGHEST)
    return y.astype(jnp.float32)                                 # (B, HW)


def _box3(t, r):
    """Zero-padded 3-tap box sum with dilation r along H then W.  t: (B, K, H, W)."""
    H, W = t.shape[-2], t.shape[-1]
    tp = jnp.pad(t, ((0, 0), (0, 0), (r, r), (0, 0)))
    t = tp[:, :, 0:H] + tp[:, :, r:r + H] + tp[:, :, 2 * r:2 * r + H]
    tp = jnp.pad(t, ((0, 0), (0, 0), (0, 0), (r, r)))
    return tp[:, :, :, 0:W] + tp[:, :, :, r:r + W] + tp[:, :, :, 2 * r:2 * r + W]


# --------------------------------------------------------------------------------------------
# Pallas kernel: rank-1 first layer + two bf16 MXU matmuls + epilogue, (C, pixels) layout
# --------------------------------------------------------------------------------------------
def _guided_filter_kernel(x_ref, st_ref, consts_ref, w2t_ref, w3t_ref, o_ref):
    # x_ref:      (C, T)  bf16   current pixel tile of x (channels on sublanes, pixels on lanes)
    # st_ref:     (4, T)  f32    per-pixel scalars, rows = [cov_xy, var_x, mean_x, mean_y]
    # consts_ref: (C, 4)  f32    columns = [u1*s1, u2*s1, b1, b2]   (BatchNorm folded)
    # w2t_ref:    (C, C)  bf16   conv_a[3] weight, transposed to (out, in), BN2 scale folded
    # w3t_ref:    (C, C)  bf16   conv_a[6] weight, transposed to (out, in)
    # o_ref:      (C, T)  f32
    st = st_ref[...]
    cov_xy = st[0:1, :]
    var_x = st[1:2, :]
    mean_x = st[2:3, :]
    mean_y = st[3:4, :]

    cst = consts_ref[...]
    u1 = cst[:, 0:1]
    u2 = cst[:, 1:2]
    b1 = cst[:, 2:3]
    b2 = cst[:, 3:4]

    # conv_a[0] on the two broadcast channels, collapsed to rank-1 vectors (+BN1, ReLU)
    h1 = jnp.maximum(u1 * cov_xy + u2 * var_x + b1, 0.0)                       # (C, T) f32

    # conv_a[3] (+BN2, ReLU) and conv_a[6] as bf16 x bf16 -> f32 MXU matmuls
    h2 = jnp.dot(w2t_ref[...], h1.astype(jnp.bfloat16),
                 preferred_element_type=jnp.float32) + b2
    h2 = jnp.maximum(h2, 0.0)
    a = jnp.dot(w3t_ref[...], h2.astype(jnp.bfloat16),
                preferred_element_type=jnp.float32)                            # A: (C, T)

    # b = mean_y - A * mean_x ;  out = A * x + b   (epilogue kept in f32)
    x = x_ref[...].astype(jnp.float32)
    o_ref[...] = a * x + (mean_y - a * mean_x)


# --------------------------------------------------------------------------------------------
# Tiling / wrapper
# --------------------------------------------------------------------------------------------
def _chip_defaults():
    """(target pixel tile, VMEM limit cap) — generation aware; safe fallback."""
    try:
        kind = jax.devices()[0].device_kind.lower()
    except Exception:
        kind = ""
    if "v7" in kind:
        return 4096, 56 << 20       # 64 MiB physical VMEM on v7x: keep per-step footprint modest
    return 8192, 100 << 20          # v5e / v6e: 128 MiB VMEM, push toward the HBM roofline


def _pick_tile_px(HW, B, target_px):
    """Largest lane-dense (multiple of 128) pixel tile dividing HW; when B == 1, split the
    pixel axis so both v7x TensorCores have parallel grid steps."""
    if HW % 128 != 0:
        return HW                                   # single full-extent tile (full-dim block)
    cap = min(target_px, HW if B > 1 else max(HW // 2, 128))
    cands = [t for t in range(128, cap + 1, 128) if HW % t == 0]
    return max(cands) if cands else HW


def conv_guided_filter(x_lr, y_guide, params, radius=1, tile_px=None, target_px=None):
    """x_lr: (B, 256, H, W) NCHW f32; y_guide: (B, Cg, H, W) NCHW.  Returns (B, 256, H, W) f32."""
    B, C, H, W = x_lr.shape
    assert C == C_FEAT, "module hard-codes 256 feature channels"
    HW = H * W
    r = radius
    assert 0 < r < min(H, W)

    chip_target, vmem_cap = _chip_defaults()
    if target_px is None:
        target_px = chip_target
    if tile_px is None:
        tile_px = _pick_tile_px(HW, B, target_px)
    T = tile_px
    assert HW % T == 0, "pixel tile must divide H*W"
    assert T % 128 == 0 or T == HW, "pixel tile must be lane-dense (multiple of 128) or the full image"
    n_tiles = HW // T

    # --- host-side per-pixel scalar statistics + 3x3 dilated box sums (tiny 16 B/px array) ----
    xf = x_lr.astype(jnp.float32)
    y = pca_scalar(y_guide).reshape(B, H, W)                     # PCA guide as ONE scalar/pixel
    sx = jnp.sum(xf, axis=1)                                     # sum_c x        (B, H, W)
    sxx = jnp.sum(xf * xf, axis=1)                               # sum_c x^2
    raw = jnp.stack([sx, y, y * sx, sxx], axis=1)                # (B, 4, H, W)
    boxed = _box3(raw, r)
    cnt = _box3(jnp.ones((1, 1, H, W), jnp.float32), r)[:, 0]    # positional tap count (1, H, W)
    inv_nc = 1.0 / (float(C) * cnt)                              # 1/N,  N = box_filter(ones)
    mean_x = boxed[:, 0] * inv_nc
    mean_y = boxed[:, 1] * inv_nc * float(C)
    cov_xy = boxed[:, 2] * inv_nc - mean_x * mean_y
    var_x = boxed[:, 3] * inv_nc - mean_x * mean_x
    stats = jnp.stack([cov_xy, var_x, mean_x, mean_y], axis=1).reshape(B, 4, HW).astype(jnp.float32)

    # --- kernel operands (NCHW-native (B, C, HW) view; x streamed bf16) -----------------------
    x_bf = xf.reshape(B, C, HW).astype(jnp.bfloat16)

    w1, s1, b1 = params['w1'], params['s1'], params['b1']
    w2, s2, b2 = params['w2'], params['s2'], params['b2']
    w3 = params['w3']
    u1 = jnp.sum(w1[:C], axis=0) * s1.reshape(C)                 # conv_a[0] rank-1 collapse + BN1
    u2 = jnp.sum(w1[C:], axis=0) * s1.reshape(C)
    consts = jnp.stack([u1, u2, b1.reshape(C), b2.reshape(C)], axis=1).astype(jnp.float32)  # (C, 4)
    w2t = (w2 * s2.reshape(1, C)).T.astype(jnp.bfloat16)         # (out, in), BN2 scale folded
    w3t = w3.T.astype(jnp.bfloat16)                              # (out, in)

    # --- VMEM budget / compiler params ---------------------------------------------------------
    vmem_needed = (2 * (C * T * 2 + C * T * 4 + 8 * T * 4)       # double-buffered x / out / stats
                   + 2 * (2 * C * C * 2 + C * 128 * 4)           # weights + consts
                   + 4 * C * T * 4)                              # h1 / h2 / a / x_f32 intermediates
    vmem_limit = int(min(max(vmem_needed + (4 << 20), 32 << 20), vmem_cap))

    cost = pl.CostEstimate(
        flops=2 * 2 * B * HW * C * C,                            # the two (C,C)x(C,T) matmuls
        transcendentals=0,
        bytes_accessed=B * HW * C * (2 + 4) + B * HW * 4 * 4 + 2 * C * C * 2 + C * 4 * 4)

    out_flat = pl.pallas_call(
        _guided_filter_kernel,
        out_shape=jax.ShapeDtypeStruct((B, C, HW), jnp.float32),
        grid=(B, n_tiles),
        in_specs=[
            pl.BlockSpec((None, C, T), lambda b, j: (b, 0, j)),  # x tile (bf16)
            pl.BlockSpec((None, 4, T), lambda b, j: (b, 0, j)),  # boxed per-pixel stats tile
            pl.BlockSpec((C, 4), lambda b, j: (0, 0)),           # folded rank-1 vectors + BN biases
            pl.BlockSpec((C, C), lambda b, j: (0, 0)),           # conv_a[3] weight (bf16, transposed)
            pl.BlockSpec((C, C), lambda b, j: (0, 0)),           # conv_a[6] weight (bf16, transposed)
        ],
        out_specs=pl.BlockSpec((None, C, T), lambda b, j: (b, 0, j)),
        compiler_params=pltpu.CompilerParams(
            dimension_semantics=("parallel", "parallel"),
            vmem_limit_bytes=vmem_limit),
        cost_estimate=cost,
    )(x_bf, stats, consts, w2t, w3t)

    return out_flat.reshape(B, C, H, W)


# --------------------------------------------------------------------------------------------
# Parameters & plain-JAX reference (literal translation of the PyTorch forward)
# --------------------------------------------------------------------------------------------
def init_params(key, C=C_FEAT, eps=1e-5):
    ks = jax.random.split(key, 11)
    # 1x1-conv weights stored as (in_channels, out_channels)
    w1 = jax.random.normal(ks[0], (2 * C, C), jnp.float32) / jnp.sqrt(2.0 * C)
    w2 = jax.random.normal(ks[1], (C, C), jnp.float32) / jnp.sqrt(float(C))
    w3 = jax.random.normal(ks[2], (C, C), jnp.float32) / jnp.sqrt(float(C))

    # TODO(synk): BatchNorm2d is implemented in eval mode (running statistics folded into a
    # per-channel scale/bias); training-mode batch statistics are not implemented.
    def bn(kg, kb, km, kv):
        gamma = 1.0 + 0.2 * jax.random.normal(kg, (C,), jnp.float32)
        beta = 0.1 * jax.random.normal(kb, (C,), jnp.float32)
        rmean = 0.1 * jax.random.normal(km, (C,), jnp.float32)
        rvar = 0.5 + jax.random.uniform(kv, (C,), jnp.float32)
        scale = gamma / jnp.sqrt(rvar + eps)
        bias = beta - rmean * scale
        return scale.reshape(1, C), bias.reshape(1, C)

    s1, b1 = bn(ks[3], ks[4], ks[5], ks[6])
    s2, b2 = bn(ks[7], ks[8], ks[9], ks[10])
    return dict(w1=w1, w2=w2, w3=w3, s1=s1, b1=b1, s2=s2, b2=b2)


def reference_forward(x_lr, y_lr_nchw, params, radius=1):
    """Literal plain-JAX translation of the PyTorch forward (dense all-ones 3x3 conv etc.)."""
    B, C, H, W = x_lr.shape
    hp = jax.lax.Precision.HIGHEST
    w_box = jnp.ones((C, C, 3, 3), jnp.float32)

    def box(t):
        return jax.lax.conv_general_dilated(
            t, w_box, window_strides=(1, 1),
            padding=[(radius, radius), (radius, radius)],
            rhs_dilation=(radius, radius),
            dimension_numbers=('NCHW', 'OIHW', 'NCHW'), precision=hp)

    N = box(jnp.ones_like(x_lr))
    mean_x = box(x_lr) / N
    mean_y = box(y_lr_nchw) / N
    cov_xy = box(x_lr * y_lr_nchw) / N - mean_x * mean_y
    var_x = box(x_lr * x_lr) / N - mean_x * mean_x
    cat = jnp.concatenate([cov_xy, var_x], axis=1)

    def conv1x1(t, w):
        return jnp.einsum('bihw,io->bohw', t, w, precision=hp)

    def bn(t, s, b):
        return t * s.reshape(1, C, 1, 1) + b.reshape(1, C, 1, 1)

    h = jnp.maximum(bn(conv1x1(cat, params['w1']), params['s1'], params['b1']), 0.0)
    h = jnp.maximum(bn(conv1x1(h, params['w2']), params['s2'], params['b2']), 0.0)
    A = conv1x1(h, params['w3'])
    b_ = mean_y - A * mean_x
    return A * x_lr + b_


if __name__ == "__main__":
    B, C, H, W, Cg = 2, C_FEAT, 16, 16, 4
    key = jax.random.PRNGKey(0)
    kp, kx, ky = jax.random.split(key, 3)

    params = init_params(kp)
    x_lr = jax.random.normal(kx, (B, C, H, W), jnp.float32)
    y_guide = jax.random.normal(ky, (B, Cg, H, W), jnp.float32)

    # tile_px=128 -> 2 pixel tiles per batch element, exercising the multi-tile (halo-free) path
    out = conv_guided_filter(x_lr, y_guide, params, radius=1, tile_px=128)
    out = jax.block_until_ready(out)
    assert out.shape == (B, C, H, W)
    assert bool(jnp.all(jnp.isfinite(out)))

    # sanity check against a literal plain-JAX translation of the PyTorch forward
    y_scalar = pca_scalar(y_guide)                                       # (B, HW)
    y_lr_nchw = jnp.broadcast_to(y_scalar.reshape(B, 1, H, W), (B, C, H, W))
    ref = reference_forward(x_lr, y_lr_nchw, params)
    err = float(jnp.max(jnp.abs(out - ref)))
    scale = float(jnp.max(jnp.abs(ref)))
    # tolerance accounts for the bf16 x stream and the bf16 MXU matmuls (f32 accumulation)
    assert err <= 2e-2 * scale + 1e-3, f"mismatch: max abs err {err} (ref scale {scale})"

    print("KERNEL_OK")
</pallas_src>

<mosaic_0001>
module attributes {stable_mosaic.version = 11 : i64} {
  func.func @_guided_filter_kernel(%arg0: i32, %arg1: i32, %arg2: memref<1x256x128xbf16, #tpu.memory_space<vmem>>, %arg3: memref<1x4x128xf32, #tpu.memory_space<vmem>>, %arg4: memref<256x4xf32, #tpu.memory_space<vmem>>, %arg5: memref<256x256xbf16, #tpu.memory_space<vmem>>, %arg6: memref<256x256xbf16, #tpu.memory_space<vmem>>, %arg7: memref<1x256x128xf32, #tpu.memory_space<vmem>>) attributes {dimension_semantics = [#tpu.dimension_semantics<parallel>, #tpu.dimension_semantics<parallel>], iteration_bounds = array<i64: 2, 2>, scalar_prefetch = 0 : i64, scratch_operands = 0 : i64, tpu.core_type = #tpu.core_type<tc>, window_params = [{transform_indices = @transform_0, window_bounds = array<i64: 1, 256, 128>}, {transform_indices = @transform_1, window_bounds = array<i64: 1, 4, 128>}, {pipeline_mode = #tpu.pipeline_mode<synchronous>, transform_indices = @transform_2, window_bounds = array<i64: 256, 4>}, {pipeline_mode = #tpu.pipeline_mode<synchronous>, transform_indices = @transform_3, window_bounds = array<i64: 256, 256>}, {pipeline_mode = #tpu.pipeline_mode<synchronous>, transform_indices = @transform_4, window_bounds = array<i64: 256, 256>}, {transform_indices = @transform_5, window_bounds = array<i64: 1, 256, 128>}]} {
    %c0 = arith.constant 0 : index
    %c0_0 = arith.constant 0 : index
    %c0_1 = arith.constant 0 : index
    %0 = vector.load %arg3[%c0, %c0_0, %c0_1] : memref<1x4x128xf32, #tpu.memory_space<vmem>>, vector<1x4x128xf32>
    %1 = vector.shape_cast %0 : vector<1x4x128xf32> to vector<4x128xf32>
    %2 = vector.extract_strided_slice %1 {offsets = [0, 0], sizes = [1, 128], strides = [1, 1]} : vector<4x128xf32> to vector<1x128xf32>
    %3 = vector.extract_strided_slice %1 {offsets = [1, 0], sizes = [1, 128], strides = [1, 1]} : vector<4x128xf32> to vector<1x128xf32>
    %4 = vector.extract_strided_slice %1 {offsets = [2, 0], sizes = [1, 128], strides = [1, 1]} : vector<4x128xf32> to vector<1x128xf32>
    %5 = vector.extract_strided_slice %1 {offsets = [3, 0], sizes = [1, 128], strides = [1, 1]} : vector<4x128xf32> to vector<1x128xf32>
    %c0_2 = arith.constant 0 : index
    %c0_3 = arith.constant 0 : index
    %6 = vector.load %arg4[%c0_2, %c0_3] : memref<256x4xf32, #tpu.memory_space<vmem>>, vector<256x4xf32>
    %7 = vector.extract_strided_slice %6 {offsets = [0, 0], sizes = [256, 1], strides = [1, 1]} : vector<256x4xf32> to vector<256x1xf32>
    %8 = vector.extract_strided_slice %6 {offsets = [0, 1], sizes = [256, 1], strides = [1, 1]} : vector<256x4xf32> to vector<256x1xf32>
    %9 = vector.extract_strided_slice %6 {offsets = [0, 2], sizes = [256, 1], strides = [1, 1]} : vector<256x4xf32> to vector<256x1xf32>
    %10 = vector.extract_strided_slice %6 {offsets = [0, 3], sizes = [256, 1], strides = [1, 1]} : vector<256x4xf32> to vector<256x1xf32>
    %11 = vector.broadcast %7 : vector<256x1xf32> to vector<256x128xf32>
    %12 = vector.broadcast %2 : vector<1x128xf32> to vector<256x128xf32>
    %13 = arith.mulf %11, %12 : vector<256x128xf32>
    %14 = vector.broadcast %8 : vector<256x1xf32> to vector<256x128xf32>
    %15 = vector.broadcast %3 : vector<1x128xf32> to vector<256x128xf32>
    %16 = arith.mulf %14, %15 : vector<256x128xf32>
    %17 = arith.addf %13, %16 : vector<256x128xf32>
    %18 = vector.broadcast %9 : vector<256x1xf32> to vector<256x128xf32>
    %19 = arith.addf %17, %18 : vector<256x128xf32>
    %cst = arith.constant 0.000000e+00 : f32
    %20 = vector.broadcast %cst : f32 to vector<256x128xf32>
    %21 = arith.maximumf %19, %20 : vector<256x128xf32>
    %c0_4 = arith.constant 0 : index
    %c0_5 = arith.constant 0 : index
    %22 = vector.load %arg5[%c0_4, %c0_5] : memref<256x256xbf16, #tpu.memory_space<vmem>>, vector<256x256xbf16>
    %23 = arith.truncf %21 : vector<256x128xf32> to vector<256x128xbf16>
    %cst_6 = arith.constant dense<0.000000e+00> : vector<256x128xf32>
    %24 = tpu.matmul %22, %23, %cst_6 {dimension_numbers = #tpu.dot_dimension_numbers<[1], [0], [0], [1], [0, 0, 1, 1], [], []>} : vector<256x256xbf16>, vector<256x128xbf16>, vector<256x128xf32> -> vector<256x128xf32>
    %25 = vector.broadcast %10 : vector<256x1xf32> to vector<256x128xf32>
    %26 = arith.addf %24, %25 : vector<256x128xf32>
    %cst_7 = arith.constant 0.000000e+00 : f32
    %27 = vector.broadcast %cst_7 : f32 to vector<256x128xf32>
    %28 = arith.maximumf %26, %27 : vector<256x128xf32>
    %c0_8 = arith.constant 0 : index
    %c0_9 = arith.constant 0 : index
    %29 = vector.load %arg6[%c0_8, %c0_9] : memref<256x256xbf16, #tpu.memory_space<vmem>>, vector<256x256xbf16>
    %30 = arith.truncf %28 : vector<256x128xf32> to vector<256x128xbf16>
    %cst_10 = arith.constant dense<0.000000e+00> : vector<256x128xf32>
    %31 = tpu.matmul %29, %30, %cst_10 {dimension_numbers = #tpu.dot_dimension_numbers<[1], [0], [0], [1], [0, 0, 1, 1], [], []>} : vector<256x256xbf16>, vector<256x128xbf16>, vector<256x128xf32> -> vector<256x128xf32>
    %c0_11 = arith.constant 0 : index
    %c0_12 = arith.constant 0 : index
    %c0_13 = arith.constant 0 : index
    %32 = vector.load %arg2[%c0_11, %c0_12, %c0_13] : memref<1x256x128xbf16, #tpu.memory_space<vmem>>, vector<1x256x128xbf16>
    %33 = vector.shape_cast %32 : vector<1x256x128xbf16> to vector<256x128xbf16>
    %34 = arith.extf %33 : vector<256x128xbf16> to vector<256x128xf32>
    %35 = arith.mulf %31, %34 : vector<256x128xf32>
    %36 = vector.broadcast %4 : vector<1x128xf32> to vector<256x128xf32>
    %37 = arith.mulf %31, %36 : vector<256x128xf32>
    %38 = vector.broadcast %5 : vector<1x128xf32> to vector<256x128xf32>
    %39 = arith.subf %38, %37 : vector<256x128xf32>
    %40 = arith.addf %35, %39 : vector<256x128xf32>
    %c0_14 = arith.constant 0 : index
    %c0_15 = arith.constant 0 : index
    %c0_16 = arith.constant 0 : index
    %41 = vector.load %arg7[%c0_14, %c0_15, %c0_16] : memref<1x256x128xf32, #tpu.memory_space<vmem>>, vector<1x256x128xf32>
    %42 = vector.shape_cast %41 : vector<1x256x128xf32> to vector<256x128xf32>
    %43 = vector.shape_cast %40 : vector<256x128xf32> to vector<1x256x128xf32>
    tpu.vector_store %arg7[%c0_14, %c0_15, %c0_16], %43 {strides = array<i32>} : memref<1x256x128xf32, #tpu.memory_space<vmem>>, vector<1x256x128xf32>,
    return
  }
  func.func @transform_0(%arg0: i32, %arg1: i32) -> (i32, i32, i32) {
    %c0_i32 = arith.constant 0 : i32
    %c0_i32_0 = arith.constant 0 : i32
    return %arg0, %c0_i32, %arg1 : i32, i32, i32
  }
  func.func @transform_1(%arg0: i32, %arg1: i32) -> (i32, i32, i32) {
    %c0_i32 = arith.constant 0 : i32
    %c0_i32_0 = arith.constant 0 : i32
    return %arg0, %c0_i32, %arg1 : i32, i32, i32
  }
  func.func @transform_2(%arg0: i32, %arg1: i32) -> (i32, i32) {
    %c0_i32 = arith.constant 0 : i32
    %c0_i32_0 = arith.constant 0 : i32
    %c0_i32_1 = arith.constant 0 : i32
    return %c0_i32, %c0_i32_0 : i32, i32
  }
  func.func @transform_3(%arg0: i32, %arg1: i32) -> (i32, i32) {
    %c0_i32 = arith.constant 0 : i32
    %c0_i32_0 = arith.constant 0 : i32
    %c0_i32_1 = arith.constant 0 : i32
    return %c0_i32, %c0_i32_0 : i32, i32
  }
  func.func @transform_4(%arg0: i32, %arg1: i32) -> (i32, i32) {
    %c0_i32 = arith.constant 0 : i32
    %c0_i32_0 = arith.constant 0 : i32
    %c0_i32_1 = arith.constant 0 : i32
    return %c0_i32, %c0_i32_0 : i32, i32
  }
  func.func @transform_5(%arg0: i32, %arg1: i32) -> (i32, i32, i32) {
    %c0_i32 = arith.constant 0 : i32
    %c0_i32_0 = arith.constant 0 : i32
    return %arg0, %c0_i32, %arg1 : i32, i32, i32
  }
}

</mosaic_0001>

<llo_original>
// kernel: tpu_custom_call.1
$region0: #{tpu_custom_call.1}
  #allocation0 [shape = 'u32[]', space=smem, size = 0x4, offset = 0x4, fixed_abs, tag = 'smem constant byte address 0x4 - core index']
  #allocation1 [shape = 'u32[144,128]{1,0:T(1,128)}', space=vmem, size = 0x12000, scoped, tag = 'internal scratch']
  %s0 = inlined_call_operand.hbm [shape: bf16[2,256,256], index: 0, kind: input, shape index: {}]
  %s1 = inlined_call_operand.vmem [shape: f32[2,4,256], index: 1, kind: input, shape index: {}]
  %s2 = inlined_call_operand.vmem [shape: f32[256,4], index: 2, kind: input, shape index: {}]
  %s3 = inlined_call_operand.vmem [shape: bf16[256,256], index: 3, kind: input, shape index: {}]
  %s4 = inlined_call_operand.hbm [shape: bf16[256,256], index: 4, kind: input, shape index: {}]
  %s5 = inlined_call_operand.hbm [shape: f32[2,256,256], index: 5, kind: output, shape index: {}]
  %s6 = sld [smem:[#allocation0]]
  $region61: #{tpu_custom_call.1} parent=0
    _
  %s8 = ssub.s32 1, %s6
  %s9 = scalar_select 0, %s8, %s6
  $region1: #{tpu_custom_call.1} parent=0
    #allocation2 [shape = 'u8[131072]{0}', space=vmem, size = 0x20000, scoped, tag = 'input window, operand 0']
    #allocation3 [shape = 's32[2]{0}', space=sflag, size = 0x8, scoped, tag = 'scoped memory for tpu_custom_call.1']
    #allocation4 [shape = 's32[2]{0}', space=sflag, size = 0x8, scoped, tag = 'scoped memory for tpu_custom_call.1']
    #allocation5 [shape = 'u8[131072]{0}', space=vmem, size = 0x20000, scoped, tag = 'input window, operand 4, single buffered']
    #allocation6 [shape = 's32[1]{0}', space=sflag, size = 0x4, scoped, tag = 'scoped memory for tpu_custom_call.1']
    #allocation7 [shape = 'u8[262144]{0}', space=vmem, size = 0x40000, scoped, tag = 'output window, operand 0']
    %10 = vsyncpa [#allocation3], 0
    %s11 = scalar_lea.sflag [#allocation3], 1
    %12 = vsyncpa %s11, 0
    %13 = vsyncpa [#allocation6], 0
    %14 = vsyncpa [#allocation4], 0
    %s15 = scalar_lea.sflag [#allocation4], 1
    %16 = vsyncpa %s15, 0
    loop: start=0, step=1, limit=6
    $region2: #{tpu_custom_call.1} parent=1 // loop_pre_header
      _
    $region3: #{tpu_custom_call.1} parent=1 // loop_header
      %s18 = sphi 0, %s22
      %p19 = scmp.ge.s32.totalorder %s18, 6
      %s25 = sphi 0, %s37
      %s26 = sphi 0, %s33
      %s27 = sphi 0, %s25
      %s28 = sphi 0, %s26
      %s29 = sphi 0, %s27
      %s30 = sphi 0, %s28
      %s42 = sphi 0, %s44
      %s45 = sphi 0, %s42
      %s46 = sphi 0, %s45
      %s62 = sphi 0, %s46
      %s70 = sphi 0, %s72
      %s73 = sphi 0, %s70
      %s74 = sphi 0, %s73
      %s90 = sphi 0, %s74
      %s94 = sphi 0, %s94
      %s96 = sphi 0, %s94
      %s97 = sphi 0, %s96
      %s111 = sphi 0, %s97
      %s115 = sphi 0, %s115
      %s117 = sphi 0, %s115
      %s118 = sphi 0, %s117
      %s132 = sphi 0, %s118
      %s136 = sphi 0, %s136
      %s138 = sphi 0, %s136
      %s139 = sphi 0, %s138
      %s153 = sphi 0, %s139
      %s161 = sphi 0, %s163
      %s164 = sphi 0, %s161
      %s165 = sphi 0, %s164
      %s181 = sphi 0, %s165
    $region4: #{tpu_custom_call.1} parent=1 // loop_header_branch
      %21 = sbr.rel (%p19) target = $region8
    $region5: #{tpu_custom_call.1} parent=1 // loop_body
      %s23 = ssub.s32 %s18, 1
      %s24 = ssub.s32 %s18, 2
      %s31 = sadd.s32 1, %s26
      %p32 = scmp.ge.s32.totalorder %s31, 2
      %s33 = scalar_select %p32, 0, %s31
      %s34 = sadd.s32 1, %s25
      %s35 = scalar_select %p32, %s34, %s25
      %p36 = scmp.ge.s32.totalorder %s35, 2
      %s37 = scalar_select %p36, 0, %s35
      %s38 = ssub.s32 %s25, %s37
      %s39 = ssub.s32 %s26, %s33
      %s40 = sor.u32 %s38, %s39
      %p41 = scmp.eq.s32.totalorder %s40, 0
      %s43 = sadd.s32 %s42, 1
      %s44 = scalar_select %p41, %s42, %s43
      %p47 = pneg %p41
      %p48 = scmp.eq.s32.totalorder %s18, 3
      %p49 = por %p47, %p48
      %p50 = scmp.ne.s32.totalorder %s42, %s45
      %p51 = scmp.eq.s32.totalorder %s18, 0
      %p52 = por %p50, %p51
      %p53 = scmp.ne.s32.totalorder %s42, %s45
      %p54 = scmp.eq.s32.totalorder %s23, 3
      %p55 = por %p53, %p54
      %p56 = scmp.ne.s32.totalorder %s45, %s46
      %p57 = scmp.eq.s32.totalorder %s23, 0
      %p58 = por %p56, %p57
      %p59 = scmp.ne.s32.totalorder %s45, %s46
      %p60 = scmp.eq.s32.totalorder %s24, 3
      %p61 = por %p59, %p60
      %p63 = scmp.ne.s32.totalorder %s46, %s62
      %p64 = scmp.eq.s32.totalorder %s24, 0
      %p65 = por %p63, %p64
      %s66 = ssub.s32 %s25, %s37
      %s67 = ssub.s32 %s26, %s33
      %s68 = sor.u32 %s66, %s67
      %p69 = scmp.eq.s32.totalorder %s68, 0
      %s71 = sadd.s32 %s70, 1
      %s72 = scalar_select %p69, %s70, %s71
      %p75 = pneg %p69
      %p76 = scmp.eq.s32.totalorder %s18, 3
      %p77 = por %p75, %p76
      %p78 = scmp.ne.s32.totalorder %s70, %s73
      %p79 = scmp.eq.s32.totalorder %s18, 0
      %p80 = por %p78, %p79
      %p81 = scmp.ne.s32.totalorder %s70, %s73
      %p82 = scmp.eq.s32.totalorder %s23, 3
      %p83 = por %p81, %p82
      %p84 = scmp.ne.s32.totalorder %s73, %s74
      %p85 = scmp.eq.s32.totalorder %s23, 0
      %p86 = por %p84, %p85
      %p87 = scmp.ne.s32.totalorder %s73, %s74
      %p88 = scmp.eq.s32.totalorder %s24, 3
      %p89 = por %p87, %p88
      %p91 = scmp.ne.s32.totalorder %s74, %s90
      %p92 = scmp.eq.s32.totalorder %s24, 0
      %p93 = por %p91, %p92
      %s95 = sadd.s32 %s94, 1
      %p98 = scmp.eq.s32.totalorder %s18, 3
      %p99 = scmp.ne.s32.totalorder %s94, %s96
      %p100 = scmp.eq.s32.totalorder %s18, 0
      %p101 = por %p99, %p100
      %p102 = scmp.ne.s32.totalorder %s94, %s96
      %p103 = scmp.eq.s32.totalorder %s23, 3
      %p104 = por %p102, %p103
      %p105 = scmp.ne.s32.totalorder %s96, %s97
      %p106 = scmp.eq.s32.totalorder %s23, 0
      %p107 = por %p105, %p106
      %p108 = scmp.ne.s32.totalorder %s96, %s97
      %p109 = scmp.eq.s32.totalorder %s24, 3
      %p110 = por %p108, %p109
      %p112 = scmp.ne.s32.totalorder %s97, %s111
      %p113 = scmp.eq.s32.totalorder %s24, 0
      %p114 = por %p112, %p113
      %s116 = sadd.s32 %s115, 1
      %p119 = scmp.eq.s32.totalorder %s18, 3
      %p120 = scmp.ne.s32.totalorder %s115, %s117
      %p121 = scmp.eq.s32.totalorder %s18, 0
      %p122 = por %p120, %p121
      %p123 = scmp.ne.s32.totalorder %s115, %s117
      %p124 = scmp.eq.s32.totalorder %s23, 3
      %p125 = por %p123, %p124
      %p126 = scmp.ne.s32.totalorder %s117, %s118
      %p127 = scmp.eq.s32.totalorder %s23, 0
      %p128 = por %p126, %p127
      %p129 = scmp.ne.s32.totalorder %s117, %s118
      %p130 = scmp.eq.s32.totalorder %s24, 3
      %p131 = por %p129, %p130
      %p133 = scmp.ne.s32.totalorder %s118, %s132
      %p134 = scmp.eq.s32.totalorder %s24, 0
      %p135 = por %p133, %p134
      %s137 = sadd.s32 %s136, 1
      %p140 = scmp.eq.s32.totalorder %s18, 3
      %p141 = scmp.ne.s32.totalorder %s136, %s138
      %p142 = scmp.eq.s32.totalorder %s18, 0
      %p143 = por %p141, %p142
      %p144 = scmp.ne.s32.totalorder %s136, %s138
      %p145 = scmp.eq.s32.totalorder %s23, 3
      %p146 = por %p144, %p145
      %p147 = scmp.ne.s32.totalorder %s138, %s139
      %p148 = scmp.eq.s32.totalorder %s23, 0
      %p149 = por %p147, %p148
      %p150 = scmp.ne.s32.totalorder %s138, %s139
      %p151 = scmp.eq.s32.totalorder %s24, 3
      %p152 = por %p150, %p151
      %p154 = scmp.ne.s32.totalorder %s139, %s153
      %p155 = scmp.eq.s32.totalorder %s24, 0
      %p156 = por %p154, %p155
      %s157 = ssub.s32 %s25, %s37
      %s158 = ssub.s32 %s26, %s33
      %s159 = sor.u32 %s157, %s158
      %p160 = scmp.eq.s32.totalorder %s159, 0
      %s162 = sadd.s32 %s161, 1
      %s163 = scalar_select %p160, %s161, %s162
      %p166 = pneg %p160
      %p167 = scmp.eq.s32.totalorder %s18, 3
      %p168 = por %p166, %p167
      %p169 = scmp.ne.s32.totalorder %s161, %s164
      %p170 = scmp.eq.s32.totalorder %s18, 0
      %p171 = por %p169, %p170
      %p172 = scmp.ne.s32.totalorder %s161, %s164
      %p173 = scmp.eq.s32.totalorder %s23, 3
      %p174 = por %p172, %p173
      %p175 = scmp.ne.s32.totalorder %s164, %s165
      %p176 = scmp.eq.s32.totalorder %s23, 0
      %p177 = por %p175, %p176
      %p178 = scmp.ne.s32.totalorder %s164, %s165
      %p179 = scmp.eq.s32.totalorder %s24, 3
      %p180 = por %p178, %p179
      %p182 = scmp.ne.s32.totalorder %s165, %s181
      %p183 = scmp.eq.s32.totalorder %s24, 0
      %p184 = por %p182, %p183
      %p185 = scmp.le.s32.totalorder 1, %s18
      %p186 = scmp.lt.s32.totalorder %s18, 5
      %p187 = pnand %p185, %p186
      %p188 = pneg %p187
      // Predicated region
      $region9: #{tpu_custom_call.1} parent=5 // pred_check
        _
      $region10: #{tpu_custom_call.1} parent=5 // pred_check_branch
        %190 = sbr.rel (%p187) target = $region12
      $region11: #{tpu_custom_call.1} parent=5 // pred_region
        %s191 = ssub.s32 %s18, 1
        // Predicated region
        $region13: #{tpu_custom_call.1} parent=11 // pred_check
          %p192 = pneg %p107
        $region14: #{tpu_custom_call.1} parent=11 // pred_check_branch
          %194 = sbr.rel (%p192) target = $region16
        $region15: #{tpu_custom_call.1} parent=11 // pred_region
          _
        $region16: #{tpu_custom_call.1} parent=11 // pred_fallthru
          _
        // Predicated region
        $region17: #{tpu_custom_call.1} parent=11 // pred_check
          %p195 = pneg %p128
        $region18: #{tpu_custom_call.1} parent=11 // pred_check_branch
          %197 = sbr.rel (%p195) target = $region20
        $region19: #{tpu_custom_call.1} parent=11 // pred_region
          _
        $region20: #{tpu_custom_call.1} parent=11 // pred_fallthru
          _
        // Predicated region
        $region21: #{tpu_custom_call.1} parent=11 // pred_check
          %p198 = pneg %p149
        $region22: #{tpu_custom_call.1} parent=11 // pred_check_branch
          %200 = sbr.rel (%p198) target = $region24
        $region23: #{tpu_custom_call.1} parent=11 // pred_region
          %s202 = ssub.s32 4096, 4096
          %203 = vsyncadd [#allocation6], %s202
          %s204 = sshll.u32 [#allocation5], 4
          %s205 = int_to_ptr.vmem [resolvable:$true] %s204
          %210 = dma.hbm_to_vmem [thread:$0]  %s4, 4096, %s205, [#allocation6], 128, 128, 8
        $region24: #{tpu_custom_call.1} parent=11 // pred_fallthru
          _
      $region12: #{tpu_custom_call.1} parent=5 // pred_fallthru
        _
      %p211 = scmp.lt.s32.totalorder %s18, 4
      // Predicated region
      $region25: #{tpu_custom_call.1} parent=5 // pred_check
        %p212 = pneg %p211
      $region26: #{tpu_custom_call.1} parent=5 // pred_check_branch
        %214 = sbr.rel (%p212) target = $region28
      $region27: #{tpu_custom_call.1} parent=5 // pred_region
        // Predicated region
        $region29: #{tpu_custom_call.1} parent=27 // pred_check
          %p215 = pneg %p52
        $region30: #{tpu_custom_call.1} parent=27 // pred_check_branch
          %217 = sbr.rel (%p215) target = $region32
        $region31: #{tpu_custom_call.1} parent=27 // pred_region
          %s218 = sand.u32 %s42, 1
          %s219 = scalar_lea.sflag [#allocation3], %s218
          %s220 = sand.u32 %s42, 1
          %s221 = smul.addr %s220, 128
          %s222 = scalar_lea.vmem [#allocation2], %s221
          %s224 = ssub.s32 2048, 2048
          %225 = vsyncadd %s219, %s224
          %s226 = smul.addr %s25, 64
          %s227 = sadd.s32 %s26, %s226
          %s228 = smul.addr %s227, 64
          %s229 = scalar_lea.hbm %s0, %s228
          %s230 = sshll.u32 %s222, 4
          %s231 = int_to_ptr.vmem [resolvable:$true] %s230
          %236 = dma.hbm_to_vmem [thread:$0]  %s229, 2048, %s231, %s219, 128, 64, 4
        $region32: #{tpu_custom_call.1} parent=27 // pred_fallthru
          _
        // Predicated region
        $region33: #{tpu_custom_call.1} parent=27 // pred_check
          %p237 = pneg %p80
        $region34: #{tpu_custom_call.1} parent=27 // pred_check_branch
          %239 = sbr.rel (%p237) target = $region36
        $region35: #{tpu_custom_call.1} parent=27 // pred_region
          %p240 = scmp.lt.s32.totalorder %s25, 1
          %s241 = scalar_select %p240, %s25, 1
          %p242 = scmp.lt.s32.totalorder %s26, 1
          %s243 = scalar_select %p242, %s26, 1
          %s244 = smul.addr %s241, 2
          %s245 = sadd.s32 %s243, %s244
          %s246 = smul.addr %s245, 4
          %s247 = scalar_lea.vmem %s1, %s246
        $region36: #{tpu_custom_call.1} parent=27 // pred_fallthru
          _
      $region28: #{tpu_custom_call.1} parent=5 // pred_fallthru
        _
      %p248 = scmp.le.s32.totalorder 1, %s18
      %p249 = scmp.lt.s32.totalorder %s18, 5
      %p250 = pnand %p248, %p249
      %p251 = pneg %p250
      // Predicated region
      $region37: #{tpu_custom_call.1} parent=5 // pred_check
        _
      $region38: #{tpu_custom_call.1} parent=5 // pred_check_branch
        %253 = sbr.rel (%p250) target = $region40
      $region39: #{tpu_custom_call.1} parent=5 // pred_region
        %s254 = ssub.s32 %s18, 1
        %s255 = sand.u32 %s45, 1
        %s256 = scalar_lea.sflag [#allocation3], %s255
        %s257 = sand.u32 %s45, 1
        %s258 = smul.addr %s257, 128
        %s259 = scalar_lea.vmem [#allocation2], %s258
        // Predicated region
        $region41: #{tpu_custom_call.1} parent=39 // pred_check
          %p260 = pneg %p58
        $region42: #{tpu_custom_call.1} parent=39 // pred_check_branch
          %262 = sbr.rel (%p260) target = $region44
        $region43: #{tpu_custom_call.1} parent=39 // pred_region
          %263 = dma.done %s256, 2048
        $region44: #{tpu_custom_call.1} parent=39 // pred_fallthru
          _
        // Predicated region
        $region45: #{tpu_custom_call.1} parent=39 // pred_check
          %p264 = pneg %p149
        $region46: #{tpu_custom_call.1} parent=39 // pred_check_branch
          %266 = sbr.rel (%p264) target = $region48
        $region47: #{tpu_custom_call.1} parent=39 // pred_region
          %267 = dma.done [#allocation6], 4096
        $region48: #{tpu_custom_call.1} parent=39 // pred_fallthru
          _
        %s268 = sand.u32 %s45, 1
        %s269 = scalar_lea.sflag [#allocation3], %s268
        %s270 = sand.u32 %s45, 1
        %s271 = smul.addr %s270, 128
        %s272 = scalar_lea.vmem [#allocation2], %s271
        %p273 = pneg %p58
        %p274 = pneg %p55
        %p275 = scmp.lt.s32.totalorder %s27, 1
        %s276 = scalar_select %p275, %s27, 1
        %p277 = scmp.lt.s32.totalorder %s28, 1
        %s278 = scalar_select %p277, %s28, 1
        %s279 = smul.addr %s276, 2
        %s280 = sadd.s32 %s278, %s279
        %s281 = smul.addr %s280, 4
        %s282 = scalar_lea.vmem %s1, %s281
        %p283 = pneg %p86
        %p284 = pneg %p83
        %p285 = pneg %p107
        %p286 = pneg %p104
        %p287 = pneg %p128
        %p288 = pneg %p125
        %p289 = pneg %p149
        %p290 = pneg %p146
        %p291 = pneg %p177
        %p292 = pneg %p174
        %s293 = sand.u32 %s164, 1
        %s294 = scalar_lea.sflag [#allocation4], %s293
        %s295 = sand.u32 %s164, 1
        %s296 = smul.addr %s295, 256
        %s297 = scalar_lea.vmem [#allocation7], %s296
        %p298 = scmp.lt.s32.totalorder %s27, 1
        %s299 = scalar_select %p298, %s27, 1
        %p300 = scmp.lt.s32.totalorder %s28, 1
        %s301 = scalar_select %p300, %s28, 1
        %s302 = smul.addr %s299, 2
        %s303 = sadd.s32 %s301, %s302
        %s304 = smul.addr %s303, 4
        %s305 = scalar_lea.vmem %s1, %s304
        %v307 = vld [vmem:[%s305] sm:$0xf]
        %v308 = vld [vmem:[%s2] sm:$0xff]
        %v309 = vld [vmem:[%s2 + $0x8] sm:$0xff]
        %v310 = vld [vmem:[%s2 + $0x10] sm:$0xff]
        %v311 = vld [vmem:[%s2 + $0x18] sm:$0xff]
        %v312 = vld [vmem:[%s2 + $0x20] sm:$0xff]
        %v313 = vld [vmem:[%s2 + $0x28] sm:$0xff]
        %v314 = vld [vmem:[%s2 + $0x30] sm:$0xff]
        %v315 = vld [vmem:[%s2 + $0x38] sm:$0xff]
        %v316 = vld [vmem:[%s2 + $0x40] sm:$0xff]
        %v317 = vld [vmem:[%s2 + $0x48] sm:$0xff]
        %v318 = vld [vmem:[%s2 + $0x50] sm:$0xff]
        %v319 = vld [vmem:[%s2 + $0x58] sm:$0xff]
        %v320 = vld [vmem:[%s2 + $0x60] sm:$0xff]
        %v321 = vld [vmem:[%s2 + $0x68] sm:$0xff]
        %v322 = vld [vmem:[%s2 + $0x70] sm:$0xff]
        %v323 = vld [vmem:[%s2 + $0x78] sm:$0xff]
        %v324 = vld [vmem:[%s2 + $0x80] sm:$0xff]
        %v325 = vld [vmem:[%s2 + $0x88] sm:$0xff]
        %v326 = vld [vmem:[%s2 + $0x90] sm:$0xff]
        %v327 = vld [vmem:[%s2 + $0x98] sm:$0xff]
        %v328 = vld [vmem:[%s2 + $0xa0] sm:$0xff]
        %v329 = vld [vmem:[%s2 + $0xa8] sm:$0xff]
        %v330 = vld [vmem:[%s2 + $0xb0] sm:$0xff]
        %v331 = vld [vmem:[%s2 + $0xb8] sm:$0xff]
        %v332 = vld [vmem:[%s2 + $0xc0] sm:$0xff]
        %v333 = vld [vmem:[%s2 + $0xc8] sm:$0xff]
        %v334 = vld [vmem:[%s2 + $0xd0] sm:$0xff]
        %v335 = vld [vmem:[%s2 + $0xd8] sm:$0xff]
        %v336 = vld [vmem:[%s2 + $0xe0] sm:$0xff]
        %v337 = vld [vmem:[%s2 + $0xe8] sm:$0xff]
        %v338 = vld [vmem:[%s2 + $0xf0] sm:$0xff]
        %v339 = vld [vmem:[%s2 + $0xf8] sm:$0xff]
        %341 = vset.pattern.permute.xlu0 0
        %342 = vperm.xlu0 %341, %v308
        %v343 = vpop.permute.xlu0 %342
        %346 = vset.pattern.permute.xlu0 0
        %347 = vperm.xlu0 %346, %v309
        %v348 = vpop.permute.xlu0 %347
        %351 = vset.pattern.permute.xlu0 0
        %352 = vperm.xlu0 %351, %v310
        %v353 = vpop.permute.xlu0 %352
        %356 = vset.pattern.permute.xlu0 0
        %357 = vperm.xlu0 %356, %v311
        %v358 = vpop.permute.xlu0 %357
        %361 = vset.pattern.permute.xlu0 0
        %362 = vperm.xlu0 %361, %v312
        %v363 = vpop.permute.xlu0 %362
        %366 = vset.pattern.permute.xlu0 0
        %367 = vperm.xlu0 %366, %v313
        %v368 = vpop.permute.xlu0 %367
        %371 = vset.pattern.permute.xlu0 0
        %372 = vperm.xlu0 %371, %v314
        %v373 = vpop.permute.xlu0 %372
        %376 = vset.pattern.permute.xlu0 0
        %377 = vperm.xlu0 %376, %v315
        %v378 = vpop.permute.xlu0 %377
        %381 = vset.pattern.permute.xlu0 0
        %382 = vperm.xlu0 %381, %v316
        %v383 = vpop.permute.xlu0 %382
        %386 = vset.pattern.permute.xlu0 0
        %387 = vperm.xlu0 %386, %v317
        %v388 = vpop.permute.xlu0 %387
        %391 = vset.pattern.permute.xlu0 0
        %392 = vperm.xlu0 %391, %v318
        %v393 = vpop.permute.xlu0 %392
        %396 = vset.pattern.permute.xlu0 0
        %397 = vperm.xlu0 %396, %v319
        %v398 = vpop.permute.xlu0 %397
        %401 = vset.pattern.permute.xlu0 0
        %402 = vperm.xlu0 %401, %v320
        %v403 = vpop.permute.xlu0 %402
        %406 = vset.pattern.permute.xlu0 0
        %407 = vperm.xlu0 %406, %v321
        %v408 = vpop.permute.xlu0 %407
        %411 = vset.pattern.permute.xlu0 0
        %412 = vperm.xlu0 %411, %v322
        %v413 = vpop.permute.xlu0 %412
        %416 = vset.pattern.permute.xlu0 0
        %417 = vperm.xlu0 %416, %v323
        %v418 = vpop.permute.xlu0 %417
        %421 = vset.pattern.permute.xlu0 0
        %422 = vperm.xlu0 %421, %v324
        %v423 = vpop.permute.xlu0 %422
        %426 = vset.pattern.permute.xlu0 0
        %427 = vperm.xlu0 %426, %v325
        %v428 = vpop.permute.xlu0 %427
        %431 = vset.pattern.permute.xlu0 0
        %432 = vperm.xlu0 %431, %v326
        %v433 = vpop.permute.xlu0 %432
        %436 = vset.pattern.permute.xlu0 0
        %437 = vperm.xlu0 %436, %v327
        %v438 = vpop.permute.xlu0 %437
        %441 = vset.pattern.permute.xlu0 0
        %442 = vperm.xlu0 %441, %v328
        %v443 = vpop.permute.xlu0 %442
        %446 = vset.pattern.permute.xlu0 0
        %447 = vperm.xlu0 %446, %v329
        %v448 = vpop.permute.xlu0 %447
        %451 = vset.pattern.permute.xlu0 0
        %452 = vperm.xlu0 %451, %v330
        %v453 = vpop.permute.xlu0 %452
        %456 = vset.pattern.permute.xlu0 0
        %457 = vperm.xlu0 %456, %v331
        %v458 = vpop.permute.xlu0 %457
        %461 = vset.pattern.permute.xlu0 0
        %462 = vperm.xlu0 %461, %v332
        %v463 = vpop.permute.xlu0 %462
        %466 = vset.pattern.permute.xlu0 0
        %467 = vperm.xlu0 %466, %v333
        %v468 = vpop.permute.xlu0 %467
        %471 = vset.pattern.permute.xlu0 0
        %472 = vperm.xlu0 %471, %v334
        %v473 = vpop.permute.xlu0 %472
        %476 = vset.pattern.permute.xlu0 0
        %477 = vperm.xlu0 %476, %v335
        %v478 = vpop.permute.xlu0 %477
        %481 = vset.pattern.permute.xlu0 0
        %482 = vperm.xlu0 %481, %v336
        %v483 = vpop.permute.xlu0 %482
        %486 = vset.pattern.permute.xlu0 0
        %487 = vperm.xlu0 %486, %v337
        %v488 = vpop.permute.xlu0 %487
        %491 = vset.pattern.permute.xlu0 0
        %492 = vperm.xlu0 %491, %v338
        %v493 = vpop.permute.xlu0 %492
        %496 = vset.pattern.permute.xlu0 0
        %497 = vperm.xlu0 %496, %v339
        %v498 = vpop.permute.xlu0 %497
        %v500 = vlaneseq
        %v501 = vshrl.u32 %v500, 7
        %v502 = vsub.s32 0, %v501
        %v503 = vrot.slane %v307, %v502
        %v504 = vmul.f32 %v343, %v503
        %v505 = vmul.f32 %v348, %v503
        %v506 = vmul.f32 %v353, %v503
        %v507 = vmul.f32 %v358, %v503
        %v508 = vmul.f32 %v363, %v503
        %v509 = vmul.f32 %v368, %v503
        %v510 = vmul.f32 %v373, %v503
        %v511 = vmul.f32 %v378, %v503
        %v512 = vmul.f32 %v383, %v503
        %v513 = vmul.f32 %v388, %v503
        %v514 = vmul.f32 %v393, %v503
        %v515 = vmul.f32 %v398, %v503
        %v516 = vmul.f32 %v403, %v503
        %v517 = vmul.f32 %v408, %v503
        %v518 = vmul.f32 %v413, %v503
        %v519 = vmul.f32 %v418, %v503
        %v520 = vmul.f32 %v423, %v503
        %v521 = vmul.f32 %v428, %v503
        %v522 = vmul.f32 %v433, %v503
        %v523 = vmul.f32 %v438, %v503
        %v524 = vmul.f32 %v443, %v503
        %v525 = vmul.f32 %v448, %v503
        %v526 = vmul.f32 %v453, %v503
        %v527 = vmul.f32 %v458, %v503
        %v528 = vmul.f32 %v463, %v503
        %v529 = vmul.f32 %v468, %v503
        %v530 = vmul.f32 %v473, %v503
        %v531 = vmul.f32 %v478, %v503
        %v532 = vmul.f32 %v483, %v503
        %v533 = vmul.f32 %v488, %v503
        %v534 = vmul.f32 %v493, %v503
        %v535 = vmul.f32 %v498, %v503
        %536 = vset.pattern.permute.xlu0 1
        %537 = vperm.xlu0 %536, %v308
        %v538 = vpop.permute.xlu0 %537
        %540 = vset.pattern.permute.xlu0 1
        %541 = vperm.xlu0 %540, %v309
        %v542 = vpop.permute.xlu0 %541
        %544 = vset.pattern.permute.xlu0 1
        %545 = vperm.xlu0 %544, %v310
        %v546 = vpop.permute.xlu0 %545
        %548 = vset.pattern.permute.xlu0 1
        %549 = vperm.xlu0 %548, %v311
        %v550 = vpop.permute.xlu0 %549
        %552 = vset.pattern.permute.xlu0 1
        %553 = vperm.xlu0 %552, %v312
        %v554 = vpop.permute.xlu0 %553
        %556 = vset.pattern.permute.xlu0 1
        %557 = vperm.xlu0 %556, %v313
        %v558 = vpop.permute.xlu0 %557
        %560 = vset.pattern.permute.xlu0 1
        %561 = vperm.xlu0 %560, %v314
        %v562 = vpop.permute.xlu0 %561
        %564 = vset.pattern.permute.xlu0 1
        %565 = vperm.xlu0 %564, %v315
        %v566 = vpop.permute.xlu0 %565
        %568 = vset.pattern.permute.xlu0 1
        %569 = vperm.xlu0 %568, %v316
        %v570 = vpop.permute.xlu0 %569
        %572 = vset.pattern.permute.xlu0 1
        %573 = vperm.xlu0 %572, %v317
        %v574 = vpop.permute.xlu0 %573
        %576 = vset.pattern.permute.xlu0 1
        %577 = vperm.xlu0 %576, %v318
        %v578 = vpop.permute.xlu0 %577
        %580 = vset.pattern.permute.xlu0 1
        %581 = vperm.xlu0 %580, %v319
        %v582 = vpop.permute.xlu0 %581
        %584 = vset.pattern.permute.xlu0 1
        %585 = vperm.xlu0 %584, %v320
        %v586 = vpop.permute.xlu0 %585
        %588 = vset.pattern.permute.xlu0 1
        %589 = vperm.xlu0 %588, %v321
        %v590 = vpop.permute.xlu0 %589
        %592 = vset.pattern.permute.xlu0 1
        %593 = vperm.xlu0 %592, %v322
        %v594 = vpop.permute.xlu0 %593
        %596 = vset.pattern.permute.xlu0 1
        %597 = vperm.xlu0 %596, %v323
        %v598 = vpop.permute.xlu0 %597
        %600 = vset.pattern.permute.xlu0 1
        %601 = vperm.xlu0 %600, %v324
        %v602 = vpop.permute.xlu0 %601
        %604 = vset.pattern.permute.xlu0 1
        %605 = vperm.xlu0 %604, %v325
        %v606 = vpop.permute.xlu0 %605
        %608 = vset.pattern.permute.xlu0 1
        %609 = vperm.xlu0 %608, %v326
        %v610 = vpop.permute.xlu0 %609
        %612 = vset.pattern.permute.xlu0 1
        %613 = vperm.xlu0 %612, %v327
        %v614 = vpop.permute.xlu0 %613
        %616 = vset.pattern.permute.xlu0 1
        %617 = vperm.xlu0 %616, %v328
        %v618 = vpop.permute.xlu0 %617
        %620 = vset.pattern.permute.xlu0 1
        %621 = vperm.xlu0 %620, %v329
        %v622 = vpop.permute.xlu0 %621
        %624 = vset.pattern.permute.xlu0 1
        %625 = vperm.xlu0 %624, %v330
        %v626 = vpop.permute.xlu0 %625
        %628 = vset.pattern.permute.xlu0 1
        %629 = vperm.xlu0 %628, %v331
        %v630 = vpop.permute.xlu0 %629
        %632 = vset.pattern.permute.xlu0 1
        %633 = vperm.xlu0 %632, %v332
        %v634 = vpop.permute.xlu0 %633
        %636 = vset.pattern.permute.xlu0 1
        %637 = vperm.xlu0 %636, %v333
        %v638 = vpop.permute.xlu0 %637
        %640 = vset.pattern.permute.xlu0 1
        %641 = vperm.xlu0 %640, %v334
        %v642 = vpop.permute.xlu0 %641
        %644 = vset.pattern.permute.xlu0 1
        %645 = vperm.xlu0 %644, %v335
        %v646 = vpop.permute.xlu0 %645
        %648 = vset.pattern.permute.xlu0 1
        %649 = vperm.xlu0 %648, %v336
        %v650 = vpop.permute.xlu0 %649
        %652 = vset.pattern.permute.xlu0 1
        %653 = vperm.xlu0 %652, %v337
        %v654 = vpop.permute.xlu0 %653
        %656 = vset.pattern.permute.xlu0 1
        %657 = vperm.xlu0 %656, %v338
        %v658 = vpop.permute.xlu0 %657
        %660 = vset.pattern.permute.xlu0 1
        %661 = vperm.xlu0 %660, %v339
        %v662 = vpop.permute.xlu0 %661
        %v664 = vlaneseq
        %v665 = vshrl.u32 %v664, 7
        %v666 = vsub.s32 1, %v665
        %v667 = vrot.slane %v307, %v666
        %v668 = vmul.f32 %v538, %v667
        %v669 = vmul.f32 %v542, %v667
        %v670 = vmul.f32 %v546, %v667
        %v671 = vmul.f32 %v550, %v667
        %v672 = vmul.f32 %v554, %v667
        %v673 = vmul.f32 %v558, %v667
        %v674 = vmul.f32 %v562, %v667
        %v675 = vmul.f32 %v566, %v667
        %v676 = vmul.f32 %v570, %v667
        %v677 = vmul.f32 %v574, %v667
        %v678 = vmul.f32 %v578, %v667
        %v679 = vmul.f32 %v582, %v667
        %v680 = vmul.f32 %v586, %v667
        %v681 = vmul.f32 %v590, %v667
        %v682 = vmul.f32 %v594, %v667
        %v683 = vmul.f32 %v598, %v667
        %v684 = vmul.f32 %v602, %v667
        %v685 = vmul.f32 %v606, %v667
        %v686 = vmul.f32 %v610, %v667
        %v687 = vmul.f32 %v614, %v667
        %v688 = vmul.f32 %v618, %v667
        %v689 = vmul.f32 %v622, %v667
        %v690 = vmul.f32 %v626, %v667
        %v691 = vmul.f32 %v630, %v667
        %v692 = vmul.f32 %v634, %v667
        %v693 = vmul.f32 %v638, %v667
        %v694 = vmul.f32 %v642, %v667
        %v695 = vmul.f32 %v646, %v667
        %v696 = vmul.f32 %v650, %v667
        %v697 = vmul.f32 %v654, %v667
        %v698 = vmul.f32 %v658, %v667
        %v699 = vmul.f32 %v662, %v667
        %v700 = vadd.f32 %v504, %v668
        %v701 = vadd.f32 %v505, %v669
        %v702 = vadd.f32 %v506, %v670
        %v703 = vadd.f32 %v507, %v671
        %v704 = vadd.f32 %v508, %v672
        %v705 = vadd.f32 %v509, %v673
        %v706 = vadd.f32 %v510, %v674
        %v707 = vadd.f32 %v511, %v675
        %v708 = vadd.f32 %v512, %v676
        %v709 = vadd.f32 %v513, %v677
        %v710 = vadd.f32 %v514, %v678
        %v711 = vadd.f32 %v515, %v679
        %v712 = vadd.f32 %v516, %v680
        %v713 = vadd.f32 %v517, %v681
        %v714 = vadd.f32 %v518, %v682
        %v715 = vadd.f32 %v519, %v683
        %v716 = vadd.f32 %v520, %v684
        %v717 = vadd.f32 %v521, %v685
        %v718 = vadd.f32 %v522, %v686
        %v719 = vadd.f32 %v523, %v687
        %v720 = vadd.f32 %v524, %v688
        %v721 = vadd.f32 %v525, %v689
        %v722 = vadd.f32 %v526, %v690
        %v723 = vadd.f32 %v527, %v691
        %v724 = vadd.f32 %v528, %v692
        %v725 = vadd.f32 %v529, %v693
        %v726 = vadd.f32 %v530, %v694
        %v727 = vadd.f32 %v531, %v695
        %v728 = vadd.f32 %v532, %v696
        %v729 = vadd.f32 %v533, %v697
        %v730 = vadd.f32 %v534, %v698
        %v731 = vadd.f32 %v535, %v699
        %732 = vset.pattern.permute.xlu0 2
        %733 = vperm.xlu0 %732, %v308
        %v734 = vpop.permute.xlu0 %733
        %736 = vset.pattern.permute.xlu0 2
        %737 = vperm.xlu0 %736, %v309
        %v738 = vpop.permute.xlu0 %737
        %740 = vset.pattern.permute.xlu0 2
        %741 = vperm.xlu0 %740, %v310
        %v742 = vpop.permute.xlu0 %741
        %744 = vset.pattern.permute.xlu0 2
        %745 = vperm.xlu0 %744, %v311
        %v746 = vpop.permute.xlu0 %745
        %748 = vset.pattern.permute.xlu0 2
        %749 = vperm.xlu0 %748, %v312
        %v750 = vpop.permute.xlu0 %749
        %752 = vset.pattern.permute.xlu0 2
        %753 = vperm.xlu0 %752, %v313
        %v754 = vpop.permute.xlu0 %753
        %756 = vset.pattern.permute.xlu0 2
        %757 = vperm.xlu0 %756, %v314
        %v758 = vpop.permute.xlu0 %757
        %760 = vset.pattern.permute.xlu0 2
        %761 = vperm.xlu0 %760, %v315
        %v762 = vpop.permute.xlu0 %761
        %764 = vset.pattern.permute.xlu0 2
        %765 = vperm.xlu0 %764, %v316
        %v766 = vpop.permute.xlu0 %765
        %768 = vset.pattern.permute.xlu0 2
        %769 = vperm.xlu0 %768, %v317
        %v770 = vpop.permute.xlu0 %769
        %772 = vset.pattern.permute.xlu0 2
        %773 = vperm.xlu0 %772, %v318
        %v774 = vpop.permute.xlu0 %773
        %776 = vset.pattern.permute.xlu0 2
        %777 = vperm.xlu0 %776, %v319
        %v778 = vpop.permute.xlu0 %777
        %780 = vset.pattern.permute.xlu0 2
        %781 = vperm.xlu0 %780, %v320
        %v782 = vpop.permute.xlu0 %781
        %784 = vset.pattern.permute.xlu0 2
        %785 = vperm.xlu0 %784, %v321
        %v786 = vpop.permute.xlu0 %785
        %788 = vset.pattern.permute.xlu0 2
        %789 = vperm.xlu0 %788, %v322
        %v790 = vpop.permute.xlu0 %789
        %792 = vset.pattern.permute.xlu0 2
        %793 = vperm.xlu0 %792, %v323
        %v794 = vpop.permute.xlu0 %793
        %796 = vset.pattern.permute.xlu0 2
        %797 = vperm.xlu0 %796, %v324
        %v798 = vpop.permute.xlu0 %797
        %800 = vset.pattern.permute.xlu0 2
        %801 = vperm.xlu0 %800, %v325
        %v802 = vpop.permute.xlu0 %801
        %804 = vset.pattern.permute.xlu0 2
        %805 = vperm.xlu0 %804, %v326
        %v806 = vpop.permute.xlu0 %805
        %808 = vset.pattern.permute.xlu0 2
        %809 = vperm.xlu0 %808, %v327
        %v810 = vpop.permute.xlu0 %809
        %812 = vset.pattern.permute.xlu0 2
        %813 = vperm.xlu0 %812, %v328
        %v814 = vpop.permute.xlu0 %813
        %816 = vset.pattern.permute.xlu0 2
        %817 = vperm.xlu0 %816, %v329
        %v818 = vpop.permute.xlu0 %817
        %820 = vset.pattern.permute.xlu0 2
        %821 = vperm.xlu0 %820, %v330
        %v822 = vpop.permute.xlu0 %821
        %824 = vset.pattern.permute.xlu0 2
        %825 = vperm.xlu0 %824, %v331
        %v826 = vpop.permute.xlu0 %825
        %828 = vset.pattern.permute.xlu0 2
        %829 = vperm.xlu0 %828, %v332
        %v830 = vpop.permute.xlu0 %829
        %832 = vset.pattern.permute.xlu0 2
        %833 = vperm.xlu0 %832, %v333
        %v834 = vpop.permute.xlu0 %833
        %836 = vset.pattern.permute.xlu0 2
        %837 = vperm.xlu0 %836, %v334
        %v838 = vpop.permute.xlu0 %837
        %840 = vset.pattern.permute.xlu0 2
        %841 = vperm.xlu0 %840, %v335
        %v842 = vpop.permute.xlu0 %841
        %844 = vset.pattern.permute.xlu0 2
        %845 = vperm.xlu0 %844, %v336
        %v846 = vpop.permute.xlu0 %845
        %848 = vset.pattern.permute.xlu0 2
        %849 = vperm.xlu0 %848, %v337
        %v850 = vpop.permute.xlu0 %849
        %852 = vset.pattern.permute.xlu0 2
        %853 = vperm.xlu0 %852, %v338
        %v854 = vpop.permute.xlu0 %853
        %856 = vset.pattern.permute.xlu0 2
        %857 = vperm.xlu0 %856, %v339
        %v858 = vpop.permute.xlu0 %857
        %v860 = vadd.f32 %v700, %v734
        %v861 = vadd.f32 %v701, %v738
        %v862 = vadd.f32 %v702, %v742
        %v863 = vadd.f32 %v703, %v746
        %v864 = vadd.f32 %v704, %v750
        %v865 = vadd.f32 %v705, %v754
        %v866 = vadd.f32 %v706, %v758
        %v867 = vadd.f32 %v707, %v762
        %v868 = vadd.f32 %v708, %v766
        %v869 = vadd.f32 %v709, %v770
        %v870 = vadd.f32 %v710, %v774
        %v871 = vadd.f32 %v711, %v778
        %v872 = vadd.f32 %v712, %v782
        %v873 = vadd.f32 %v713, %v786
        %v874 = vadd.f32 %v714, %v790
        %v875 = vadd.f32 %v715, %v794
        %v876 = vadd.f32 %v716, %v798
        %v877 = vadd.f32 %v717, %v802
        %v878 = vadd.f32 %v718, %v806
        %v879 = vadd.f32 %v719, %v810
        %v880 = vadd.f32 %v720, %v814
        %v881 = vadd.f32 %v721, %v818
        %v882 = vadd.f32 %v722, %v822
        %v883 = vadd.f32 %v723, %v826
        %v884 = vadd.f32 %v724, %v830
        %v885 = vadd.f32 %v725, %v834
        %v886 = vadd.f32 %v726, %v838
        %v887 = vadd.f32 %v727, %v842
        %v888 = vadd.f32 %v728, %v846
        %v889 = vadd.f32 %v729, %v850
        %v890 = vadd.f32 %v730, %v854
        %v891 = vadd.f32 %v731, %v858
        %v892 = vmax.f32 %v860, 0.0
        %v893 = vmax.f32 %v861, 0.0
        %v894 = vmax.f32 %v862, 0.0
        %v895 = vmax.f32 %v863, 0.0
        %v896 = vmax.f32 %v864, 0.0
        %v897 = vmax.f32 %v865, 0.0
        %v898 = vmax.f32 %v866, 0.0
        %v899 = vmax.f32 %v867, 0.0
        %v900 = vmax.f32 %v868, 0.0
        %v901 = vmax.f32 %v869, 0.0
        %v902 = vmax.f32 %v870, 0.0
        %v903 = vmax.f32 %v871, 0.0
        %v904 = vmax.f32 %v872, 0.0
        %v905 = vmax.f32 %v873, 0.0
        %v906 = vmax.f32 %v874, 0.0
        %v907 = vmax.f32 %v875, 0.0
        %v908 = vmax.f32 %v876, 0.0
        %v909 = vmax.f32 %v877, 0.0
        %v910 = vmax.f32 %v878, 0.0
        %v911 = vmax.f32 %v879, 0.0
        %v912 = vmax.f32 %v880, 0.0
        %v913 = vmax.f32 %v881, 0.0
        %v914 = vmax.f32 %v882, 0.0
        %v915 = vmax.f32 %v883, 0.0
        %v916 = vmax.f32 %v884, 0.0
        %v917 = vmax.f32 %v885, 0.0
        %v918 = vmax.f32 %v886, 0.0
        %v919 = vmax.f32 %v887, 0.0
        %v920 = vmax.f32 %v888, 0.0
        %v921 = vmax.f32 %v889, 0.0
        %v922 = vmax.f32 %v890, 0.0
        %v923 = vmax.f32 %v891, 0.0
        %v924 = vld [vmem:[%s3] sm:$0xff]
        %v925 = vld [vmem:[%s3 + $0x8] sm:$0xff]
        %v926 = vld [vmem:[%s3 + $0x10] sm:$0xff]
        %v927 = vld [vmem:[%s3 + $0x18] sm:$0xff]
        %v928 = vld [vmem:[%s3 + $0x20] sm:$0xff]
        %v929 = vld [vmem:[%s3 + $0x28] sm:$0xff]
        %v930 = vld [vmem:[%s3 + $0x30] sm:$0xff]
        %v931 = vld [vmem:[%s3 + $0x38] sm:$0xff]
        %v932 = vld [vmem:[%s3 + $0x40] sm:$0xff]
        %v933 = vld [vmem:[%s3 + $0x48] sm:$0xff]
        %v934 = vld [vmem:[%s3 + $0x50] sm:$0xff]
        %v935 = vld [vmem:[%s3 + $0x58] sm:$0xff]
        %v936 = vld [vmem:[%s3 + $0x60] sm:$0xff]
        %v937 = vld [vmem:[%s3 + $0x68] sm:$0xff]
        %v938 = vld [vmem:[%s3 + $0x70] sm:$0xff]
        %v939 = vld [vmem:[%s3 + $0x78] sm:$0xff]
        %v940 = vld [vmem:[%s3 + $0x80] sm:$0xff]
        %v941 = vld [vmem:[%s3 + $0x88] sm:$0xff]
        %v942 = vld [vmem:[%s3 + $0x90] sm:$0xff]
        %v943 = vld [vmem:[%s3 + $0x98] sm:$0xff]
        %v944 = vld [vmem:[%s3 + $0xa0] sm:$0xff]
        %v945 = vld [vmem:[%s3 + $0xa8] sm:$0xff]
        %v946 = vld [vmem:[%s3 + $0xb0] sm:$0xff]
        %v947 = vld [vmem:[%s3 + $0xb8] sm:$0xff]
        %v948 = vld [vmem:[%s3 + $0xc0] sm:$0xff]
        %v949 = vld [vmem:[%s3 + $0xc8] sm:$0xff]
        %v950 = vld [vmem:[%s3 + $0xd0] sm:$0xff]
        %v951 = vld [vmem:[%s3 + $0xd8] sm:$0xff]
        %v952 = vld [vmem:[%s3 + $0xe0] sm:$0xff]
        %v953 = vld [vmem:[%s3 + $0xe8] sm:$0xff]
        %v954 = vld [vmem:[%s3 + $0xf0] sm:$0xff]
        %v955 = vld [vmem:[%s3 + $0xf8] sm:$0xff]
        %v956 = vpack.c.bf16 %v893, %v892
        %v957 = vpack.c.bf16 %v895, %v894
        %v958 = vpack.c.bf16 %v897, %v896
        %v959 = vpack.c.bf16 %v899, %v898
        %v960 = vpack.c.bf16 %v901, %v900
        %v961 = vpack.c.bf16 %v903, %v902
        %v962 = vpack.c.bf16 %v905, %v904
        %v963 = vpack.c.bf16 %v907, %v906
        %v964 = vpack.c.bf16 %v909, %v908
        %v965 = vpack.c.bf16 %v911, %v910
        %v966 = vpack.c.bf16 %v913, %v912
        %v967 = vpack.c.bf16 %v915, %v914
        %v968 = vpack.c.bf16 %v917, %v916
        %v969 = vpack.c.bf16 %v919, %v918
        %v970 = vpack.c.bf16 %v921, %v920
        %v971 = vpack.c.bf16 %v923, %v922
        %972 = vset.pattern.permute.xlu0 3
        %973 = vperm.xlu0 %972, %v308
        %v974 = vpop.permute.xlu0 %973
        %976 = vset.pattern.permute.xlu0 3
        %977 = vperm.xlu0 %976, %v309
        %v978 = vpop.permute.xlu0 %977
        %980 = vset.pattern.permute.xlu0 3
        %981 = vperm.xlu0 %980, %v310
        %v982 = vpop.permute.xlu0 %981
        %984 = vset.pattern.permute.xlu0 3
        %985 = vperm.xlu0 %984, %v311
        %v986 = vpop.permute.xlu0 %985
        %988 = vset.pattern.permute.xlu0 3
        %989 = vperm.xlu0 %988, %v312
        %v990 = vpop.permute.xlu0 %989
        %992 = vset.pattern.permute.xlu0 3
        %993 = vperm.xlu0 %992, %v313
        %v994 = vpop.permute.xlu0 %993
        %996 = vset.pattern.permute.xlu0 3
        %997 = vperm.xlu0 %996, %v314
        %v998 = vpop.permute.xlu0 %997
        %1000 = vset.pattern.permute.xlu0 3
        %1001 = vperm.xlu0 %1000, %v315
        %v1002 = vpop.permute.xlu0 %1001
        %1004 = vset.pattern.permute.xlu0 3
        %1005 = vperm.xlu0 %1004, %v316
        %v1006 = vpop.permute.xlu0 %1005
        %1008 = vset.pattern.permute.xlu0 3
        %1009 = vperm.xlu0 %1008, %v317
        %v1010 = vpop.permute.xlu0 %1009
        %1012 = vset.pattern.permute.xlu0 3
        %1013 = vperm.xlu0 %1012, %v318
        %v1014 = vpop.permute.xlu0 %1013
        %1016 = vset.pattern.permute.xlu0 3
        %1017 = vperm.xlu0 %1016, %v319
        %v1018 = vpop.permute.xlu0 %1017
        %1020 = vset.pattern.permute.xlu0 3
        %1021 = vperm.xlu0 %1020, %v320
        %v1022 = vpop.permute.xlu0 %1021
        %1024 = vset.pattern.permute.xlu0 3
        %1025 = vperm.xlu0 %1024, %v321
        %v1026 = vpop.permute.xlu0 %1025
        %1028 = vset.pattern.permute.xlu0 3
        %1029 = vperm.xlu0 %1028, %v322
        %v1030 = vpop.permute.xlu0 %1029
        %1032 = vset.pattern.permute.xlu0 3
        %1033 = vperm.xlu0 %1032, %v323
        %v1034 = vpop.permute.xlu0 %1033
        %1036 = vset.pattern.permute.xlu0 3
        %1037 = vperm.xlu0 %1036, %v324
        %v1038 = vpop.permute.xlu0 %1037
        %1040 = vset.pattern.permute.xlu0 3
        %1041 = vperm.xlu0 %1040, %v325
        %v1042 = vpop.permute.xlu0 %1041
        %1044 = vset.pattern.permute.xlu0 3
        %1045 = vperm.xlu0 %1044, %v326
        %v1046 = vpop.permute.xlu0 %1045
        %1048 = vset.pattern.permute.xlu0 3
        %1049 = vperm.xlu0 %1048, %v327
        %v1050 = vpop.permute.xlu0 %1049
        %1052 = vset.pattern.permute.xlu0 3
        %1053 = vperm.xlu0 %1052, %v328
        %v1054 = vpop.permute.xlu0 %1053
        %1056 = vset.pattern.permute.xlu0 3
        %1057 = vperm.xlu0 %1056, %v329
        %v1058 = vpop.permute.xlu0 %1057
        %1060 = vset.pattern.permute.xlu0 3
        %1061 = vperm.xlu0 %1060, %v330
        %v1062 = vpop.permute.xlu0 %1061
        %1064 = vset.pattern.permute.xlu0 3
        %1065 = vperm.xlu0 %1064, %v331
        %v1066 = vpop.permute.xlu0 %1065
        %1068 = vset.pattern.permute.xlu0 3
        %1069 = vperm.xlu0 %1068, %v332
        %v1070 = vpop.permute.xlu0 %1069
        %1072 = vset.pattern.permute.xlu0 3
        %1073 = vperm.xlu0 %1072, %v333
        %v1074 = vpop.permute.xlu0 %1073
        %1076 = vset.pattern.permute.xlu0 3
        %1077 = vperm.xlu0 %1076, %v334
        %v1078 = vpop.permute.xlu0 %1077
        %1080 = vset.pattern.permute.xlu0 3
        %1081 = vperm.xlu0 %1080, %v335
        %v1082 = vpop.permute.xlu0 %1081
        %1084 = vset.pattern.permute.xlu0 3
        %1085 = vperm.xlu0 %1084, %v336
        %v1086 = vpop.permute.xlu0 %1085
        %1088 = vset.pattern.permute.xlu0 3
        %1089 = vperm.xlu0 %1088, %v337
        %v1090 = vpop.permute.xlu0 %1089
        %1092 = vset.pattern.permute.xlu0 3
        %1093 = vperm.xlu0 %1092, %v338
        %v1094 = vpop.permute.xlu0 %1093
        %1096 = vset.pattern.permute.xlu0 3
        %1097 = vperm.xlu0 %1096, %v339
        %v1098 = vpop.permute.xlu0 %1097
        %v1132 = vunpack.c.l.b16 %v924
        %v1133 = vunpack.c.h.b16 %v924
        %v1134 = vunpack.c.l.b16 %v925
        %v1135 = vunpack.c.h.b16 %v925
        %v1136 = vunpack.c.l.b16 %v926
        %v1137 = vunpack.c.h.b16 %v926
        %v1138 = vunpack.c.l.b16 %v927
        %v1139 = vunpack.c.h.b16 %v927
        %v1140 = vunpack.c.l.b16 %v928
        %v1141 = vunpack.c.h.b16 %v928
        %v1142 = vunpack.c.l.b16 %v929
        %v1143 = vunpack.c.h.b16 %v929
        %v1144 = vunpack.c.l.b16 %v930
        %v1145 = vunpack.c.h.b16 %v930
        %v1146 = vunpack.c.l.b16 %v931
        %v1147 = vunpack.c.h.b16 %v931
        %v1148 = vunpack.c.l.b16 %v932
        %v1149 = vunpack.c.h.b16 %v932
        %v1150 = vunpack.c.l.b16 %v933
        %v1151 = vunpack.c.h.b16 %v933
        %v1152 = vunpack.c.l.b16 %v934
        %v1153 = vunpack.c.h.b16 %v934
        %v1154 = vunpack.c.l.b16 %v935
        %v1155 = vunpack.c.h.b16 %v935
        %v1156 = vunpack.c.l.b16 %v936
        %v1157 = vunpack.c.h.b16 %v936
        %v1158 = vunpack.c.l.b16 %v937
        %v1159 = vunpack.c.h.b16 %v937
        %v1160 = vunpack.c.l.b16 %v938
        %v1161 = vunpack.c.h.b16 %v938
        %v1162 = vunpack.c.l.b16 %v939
        %v1163 = vunpack.c.h.b16 %v939
        %v1164 = vunpack.c.l.b16 %v940
        %v1165 = vunpack.c.h.b16 %v940
        %v1166 = vunpack.c.l.b16 %v941
        %v1167 = vunpack.c.h.b16 %v941
        %v1168 = vunpack.c.l.b16 %v942
        %v1169 = vunpack.c.h.b16 %v942
        %v1170 = vunpack.c.l.b16 %v943
        %v1171 = vunpack.c.h.b16 %v943
        %v1172 = vunpack.c.l.b16 %v944
        %v1173 = vunpack.c.h.b16 %v944
        %v1174 = vunpack.c.l.b16 %v945
        %v1175 = vunpack.c.h.b16 %v945
        %v1176 = vunpack.c.l.b16 %v946
        %v1177 = vunpack.c.h.b16 %v946
        %v1178 = vunpack.c.l.b16 %v947
        %v1179 = vunpack.c.h.b16 %v947
        %v1180 = vunpack.c.l.b16 %v948
        %v1181 = vunpack.c.h.b16 %v948
        %v1182 = vunpack.c.l.b16 %v949
        %v1183 = vunpack.c.h.b16 %v949
        %v1184 = vunpack.c.l.b16 %v950
        %v1185 = vunpack.c.h.b16 %v950
        %v1186 = vunpack.c.l.b16 %v951
        %v1187 = vunpack.c.h.b16 %v951
        %v1188 = vunpack.c.l.b16 %v952
        %v1189 = vunpack.c.h.b16 %v952
        %v1190 = vunpack.c.l.b16 %v953
        %v1191 = vunpack.c.h.b16 %v953
        %v1192 = vunpack.c.l.b16 %v954
        %v1193 = vunpack.c.h.b16 %v954
        %v1194 = vunpack.c.l.b16 %v955
        %v1195 = vunpack.c.h.b16 %v955
        %v1196 = vpack.c.b16 %v1134, %v1132
        %v1197 = vpack.c.b16 %v1135, %v1133
        %v1198 = vpack.c.b16 %v1138, %v1136
        %v1199 = vpack.c.b16 %v1139, %v1137
        %v1200 = vpack.c.b16 %v1142, %v1140
        %v1201 = vpack.c.b16 %v1143, %v1141
        %v1202 = vpack.c.b16 %v1146, %v1144
        %v1203 = vpack.c.b16 %v1147, %v1145
        %v1204 = vpack.c.b16 %v1150, %v1148
        %v1205 = vpack.c.b16 %v1151, %v1149
        %v1206 = vpack.c.b16 %v1154, %v1152
        %v1207 = vpack.c.b16 %v1155, %v1153
        %v1208 = vpack.c.b16 %v1158, %v1156
        %v1209 = vpack.c.b16 %v1159, %v1157
        %v1210 = vpack.c.b16 %v1162, %v1160
        %v1211 = vpack.c.b16 %v1163, %v1161
        %v1212 = vpack.c.b16 %v1166, %v1164
        %v1213 = vpack.c.b16 %v1167, %v1165
        %v1214 = vpack.c.b16 %v1170, %v1168
        %v1215 = vpack.c.b16 %v1171, %v1169
        %v1216 = vpack.c.b16 %v1174, %v1172
        %v1217 = vpack.c.b16 %v1175, %v1173
        %v1218 = vpack.c.b16 %v1178, %v1176
        %v1219 = vpack.c.b16 %v1179, %v1177
        %v1220 = vpack.c.b16 %v1182, %v1180
        %v1221 = vpack.c.b16 %v1183, %v1181
        %v1222 = vpack.c.b16 %v1186, %v1184
        %v1223 = vpack.c.b16 %v1187, %v1185
        %v1224 = vpack.c.b16 %v1190, %v1188
        %v1225 = vpack.c.b16 %v1191, %v1189
        %v1226 = vpack.c.b16 %v1194, %v1192
        %v1227 = vpack.c.b16 %v1195, %v1193
        %1260 = vmatprep.subr.bf16.mxu0 0
        %1261 = vmatpush1.bf16.msra.mxu0 %v956
        %1262 = vmatprep.subr.bf16.mxu0 0
        %1263 = vmatpush1.bf16.msra.mxu0 %v957
        %1264 = vmatprep.subr.bf16.mxu0 0
        %1265 = vmatpush1.bf16.msra.mxu0 %v958
        %1266 = vmatprep.subr.bf16.mxu0 0
        %1267 = vmatpush1.bf16.msra.mxu0 %v959
        %1268 = vmatprep.subr.bf16.mxu0 0
        %1269 = vmatpush1.bf16.msra.mxu0 %v960
        %1270 = vmatprep.subr.bf16.mxu0 0
        %1271 = vmatpush1.bf16.msra.mxu0 %v961
        %1272 = vmatprep.subr.bf16.mxu0 0
        %1273 = vmatpush1.bf16.msra.mxu0 %v962
        %1274 = vmatprep.subr.bf16.mxu0 0
        %1275 = vmatpush1.bf16.msra.mxu0 %v963
        %1276 = vmatprep.subr.bf16.mxu0 0
        %1277 = vmatpush1.bf16.msra.mxu0 %v964
        %1278 = vmatprep.subr.bf16.mxu0 0
        %1279 = vmatpush1.bf16.msra.mxu0 %v965
        %1280 = vmatprep.subr.bf16.mxu0 0
        %1281 = vmatpush1.bf16.msra.mxu0 %v966
        %1282 = vmatprep.subr.bf16.mxu0 0
        %1283 = vmatpush1.bf16.msra.mxu0 %v967
        %1284 = vmatprep.subr.bf16.mxu0 0
        %1285 = vmatpush1.bf16.msra.mxu0 %v968
        %1286 = vmatprep.subr.bf16.mxu0 0
        %1287 = vmatpush1.bf16.msra.mxu0 %v969
        %1288 = vmatprep.subr.bf16.mxu0 0
        %1289 = vmatpush1.bf16.msra.mxu0 %v970
        %1290 = vmatprep.subr.bf16.mxu0 0
        %1291 = vmatpush1.bf16.msra.mxu0 %v971
        %1292 = vmatprep.mubr.bf16.mxu0 %v1197
        %1293 = vmatmul.mubr.bf16.gmra.mrb[0].mxu0 %v1196
        %v1294 = vpop.f32.mrb[0].mxu0
        %v1295 = vadd.f32 %v974, %v1294
        %v1296 = vpop.f32.mrb[0].mxu0
        %v1297 = vpop.f32.mrb[0].mxu0
        %v1298 = vadd.f32 %v978, %v1297
        %v1299 = vpop.f32.mrb[0].mxu0
        %1300 = vmatprep.mubr.bf16.mxu0 %v1199
        %1301 = vmatmul.mubr.bf16.gmra.mrb[0].mxu0 %v1198
        %v1302 = vpop.f32.mrb[0].mxu0
        %v1303 = vadd.f32 %v982, %v1302
        %v1304 = vpop.f32.mrb[0].mxu0
        %v1305 = vpop.f32.mrb[0].mxu0
        %v1306 = vadd.f32 %v986, %v1305
        %v1307 = vpop.f32.mrb[0].mxu0
        %1308 = vmatprep.mubr.bf16.mxu0 %v1201
        %1309 = vmatmul.mubr.bf16.gmra.mrb[0].mxu0 %v1200
        %v1310 = vpop.f32.mrb[0].mxu0
        %v1311 = vadd.f32 %v990, %v1310
        %v1312 = vpop.f32.mrb[0].mxu0
        %v1313 = vpop.f32.mrb[0].mxu0
        %v1314 = vadd.f32 %v994, %v1313
        %v1315 = vpop.f32.mrb[0].mxu0
        %1316 = vmatprep.mubr.bf16.mxu0 %v1203
        %1317 = vmatmul.mubr.bf16.gmra.mrb[0].mxu0 %v1202
        %v1318 = vpop.f32.mrb[0].mxu0
        %v1319 = vadd.f32 %v998, %v1318
        %v1320 = vpop.f32.mrb[0].mxu0
        %v1321 = vpop.f32.mrb[0].mxu0
        %v1322 = vadd.f32 %v1002, %v1321
        %v1323 = vpop.f32.mrb[0].mxu0
        %1324 = vmatprep.mubr.bf16.mxu0 %v1205
        %1325 = vmatmul.mubr.bf16.gmra.mrb[0].mxu0 %v1204
        %v1326 = vpop.f32.mrb[0].mxu0
        %v1327 = vadd.f32 %v1006, %v1326
        %v1328 = vpop.f32.mrb[0].mxu0
        %v1329 = vpop.f32.mrb[0].mxu0
        %v1330 = vadd.f32 %v1010, %v1329
        %v1331 = vpop.f32.mrb[0].mxu0
        %1332 = vmatprep.mubr.bf16.mxu0 %v1207
        %1333 = vmatmul.mubr.bf16.gmra.mrb[0].mxu0 %v1206
        %v1334 = vpop.f32.mrb[0].mxu0
        %v1335 = vadd.f32 %v1014, %v1334
        %v1336 = vpop.f32.mrb[0].mxu0
        %v1337 = vpop.f32.mrb[0].mxu0
        %v1338 = vadd.f32 %v1018, %v1337
        %v1339 = vpop.f32.mrb[0].mxu0
        %1340 = vmatprep.mubr.bf16.mxu0 %v1209
        %1341 = vmatmul.mubr.bf16.gmra.mrb[0].mxu0 %v1208
        %v1342 = vpop.f32.mrb[0].mxu0
        %v1343 = vadd.f32 %v1022, %v1342
        %v1344 = vpop.f32.mrb[0].mxu0
        %v1345 = vpop.f32.mrb[0].mxu0
        %v1346 = vadd.f32 %v1026, %v1345
        %v1347 = vpop.f32.mrb[0].mxu0
        %1348 = vmatprep.mubr.bf16.mxu0 %v1211
        %1349 = vmatmul.mubr.bf16.gmra.mrb[0].mxu0 %v1210
        %v1350 = vpop.f32.mrb[0].mxu0
        %v1351 = vadd.f32 %v1030, %v1350
        %v1352 = vpop.f32.mrb[0].mxu0
        %v1353 = vpop.f32.mrb[0].mxu0
        %v1354 = vadd.f32 %v1034, %v1353
        %v1355 = vpop.f32.mrb[0].mxu0
        %1356 = vmatprep.mubr.bf16.mxu0 %v1213
        %1357 = vmatmul.mubr.bf16.gmra.mrb[0].mxu0 %v1212
        %v1358 = vpop.f32.mrb[0].mxu0
        %v1359 = vadd.f32 %v1038, %v1358
        %v1360 = vpop.f32.mrb[0].mxu0
        %v1361 = vpop.f32.mrb[0].mxu0
        %v1362 = vadd.f32 %v1042, %v1361
        %v1363 = vpop.f32.mrb[0].mxu0
        %1364 = vmatprep.mubr.bf16.mxu0 %v1215
        %1365 = vmatmul.mubr.bf16.gmra.mrb[0].mxu0 %v1214
        %v1366 = vpop.f32.mrb[0].mxu0
        %v1367 = vadd.f32 %v1046, %v1366
        %v1368 = vpop.f32.mrb[0].mxu0
        %v1369 = vpop.f32.mrb[0].mxu0
        %v1370 = vadd.f32 %v1050, %v1369
        %v1371 = vpop.f32.mrb[0].mxu0
        %1372 = vmatprep.mubr.bf16.mxu0 %v1217
        %1373 = vmatmul.mubr.bf16.gmra.mrb[0].mxu0 %v1216
        %v1374 = vpop.f32.mrb[0].mxu0
        %v1375 = vadd.f32 %v1054, %v1374
        %v1376 = vpop.f32.mrb[0].mxu0
        %v1377 = vpop.f32.mrb[0].mxu0
        %v1378 = vadd.f32 %v1058, %v1377
        %v1379 = vpop.f32.mrb[0].mxu0
        %1380 = vmatprep.mubr.bf16.mxu0 %v1219
        %1381 = vmatmul.mubr.bf16.gmra.mrb[0].mxu0 %v1218
        %v1382 = vpop.f32.mrb[0].mxu0
        %v1383 = vadd.f32 %v1062, %v1382
        %v1384 = vpop.f32.mrb[0].mxu0
        %v1385 = vpop.f32.mrb[0].mxu0
        %v1386 = vadd.f32 %v1066, %v1385
        %v1387 = vpop.f32.mrb[0].mxu0
        %1388 = vmatprep.mubr.bf16.mxu0 %v1221
        %1389 = vmatmul.mubr.bf16.gmra.mrb[0].mxu0 %v1220
        %v1390 = vpop.f32.mrb[0].mxu0
        %v1391 = vadd.f32 %v1070, %v1390
        %v1392 = vpop.f32.mrb[0].mxu0
        %v1393 = vpop.f32.mrb[0].mxu0
        %v1394 = vadd.f32 %v1074, %v1393
        %v1395 = vpop.f32.mrb[0].mxu0
        %1396 = vmatprep.mubr.bf16.mxu0 %v1223
        %1397 = vmatmul.mubr.bf16.gmra.mrb[0].mxu0 %v1222
        %v1398 = vpop.f32.mrb[0].mxu0
        %v1399 = vadd.f32 %v1078, %v1398
        %v1400 = vpop.f32.mrb[0].mxu0
        %v1401 = vpop.f32.mrb[0].mxu0
        %v1402 = vadd.f32 %v1082, %v1401
        %v1403 = vpop.f32.mrb[0].mxu0
        %1404 = vmatprep.mubr.bf16.mxu0 %v1225
        %1405 = vmatmul.mubr.bf16.gmra.mrb[0].mxu0 %v1224
        %v1406 = vpop.f32.mrb[0].mxu0
        %v1407 = vadd.f32 %v1086, %v1406
        %v1408 = vpop.f32.mrb[0].mxu0
        %v1409 = vpop.f32.mrb[0].mxu0
        %v1410 = vadd.f32 %v1090, %v1409
        %v1411 = vpop.f32.mrb[0].mxu0
        %1412 = vmatprep.mubr.bf16.mxu0 %v1227
        %1413 = vmatmul.mubr.bf16.gmra.mrb[0].mxu0 %v1226
        %v1414 = vpop.f32.mrb[0].mxu0
        %v1415 = vadd.f32 %v1094, %v1414
        %v1416 = vpop.f32.mrb[0].mxu0
        %v1417 = vpop.f32.mrb[0].mxu0
        %v1418 = vadd.f32 %v1098, %v1417
        %v1419 = vpop.f32.mrb[0].mxu0
        %1420 = vdwg.mxu0
        %v1421 = vmax.f32 %v1295, 0.0
        %v1422 = vmax.f32 %v1298, 0.0
        %v1423 = vmax.f32 %v1303, 0.0
        %v1424 = vmax.f32 %v1306, 0.0
        %v1425 = vmax.f32 %v1311, 0.0
        %v1426 = vmax.f32 %v1314, 0.0
        %v1427 = vmax.f32 %v1319, 0.0
        %v1428 = vmax.f32 %v1322, 0.0
        %v1429 = vmax.f32 %v1327, 0.0
        %v1430 = vmax.f32 %v1330, 0.0
        %v1431 = vmax.f32 %v1335, 0.0
        %v1432 = vmax.f32 %v1338, 0.0
        %v1433 = vmax.f32 %v1343, 0.0
        %v1434 = vmax.f32 %v1346, 0.0
        %v1435 = vmax.f32 %v1351, 0.0
        %v1436 = vmax.f32 %v1354, 0.0
        %v1437 = vmax.f32 %v1359, 0.0
        %v1438 = vmax.f32 %v1362, 0.0
        %v1439 = vmax.f32 %v1367, 0.0
        %v1440 = vmax.f32 %v1370, 0.0
        %v1441 = vmax.f32 %v1375, 0.0
        %v1442 = vmax.f32 %v1378, 0.0
        %v1443 = vmax.f32 %v1383, 0.0
        %v1444 = vmax.f32 %v1386, 0.0
        %v1445 = vmax.f32 %v1391, 0.0
        %v1446 = vmax.f32 %v1394, 0.0
        %v1447 = vmax.f32 %v1399, 0.0
        %v1448 = vmax.f32 %v1402, 0.0
        %v1449 = vmax.f32 %v1407, 0.0
        %v1450 = vmax.f32 %v1410, 0.0
        %v1451 = vmax.f32 %v1415, 0.0
        %v1452 = vmax.f32 %v1418, 0.0
        %v1453 = vld [vmem:[#allocation5] sm:$0xff]
        %v1454 = vld [vmem:[#allocation5 + $0x8] sm:$0xff]
        %v1455 = vld [vmem:[#allocation5 + $0x10] sm:$0xff]
        %v1456 = vld [vmem:[#allocation5 + $0x18] sm:$0xff]
        %v1457 = vld [vmem:[#allocation5 + $0x20] sm:$0xff]
        %v1458 = vld [vmem:[#allocation5 + $0x28] sm:$0xff]
        %v1459 = vld [vmem:[#allocation5 + $0x30] sm:$0xff]
        %v1460 = vld [vmem:[#allocation5 + $0x38] sm:$0xff]
        %v1461 = vld [vmem:[#allocation5 + $0x40] sm:$0xff]
        %v1462 = vld [vmem:[#allocation5 + $0x48] sm:$0xff]
        %v1463 = vld [vmem:[#allocation5 + $0x50] sm:$0xff]
        %v1464 = vld [vmem:[#allocation5 + $0x58] sm:$0xff]
        %v1465 = vld [vmem:[#allocation5 + $0x60] sm:$0xff]
        %v1466 = vld [vmem:[#allocation5 + $0x68] sm:$0xff]
        %v1467 = vld [vmem:[#allocation5 + $0x70] sm:$0xff]
        %v1468 = vld [vmem:[#allocation5 + $0x78] sm:$0xff]
        %v1469 = vld [vmem:[#allocation5 + $0x80] sm:$0xff]
        %v1470 = vld [vmem:[#allocation5 + $0x88] sm:$0xff]
        %v1471 = vld [vmem:[#allocation5 + $0x90] sm:$0xff]
        %v1472 = vld [vmem:[#allocation5 + $0x98] sm:$0xff]
        %v1473 = vld [vmem:[#allocation5 + $0xa0] sm:$0xff]
        %v1474 = vld [vmem:[#allocation5 + $0xa8] sm:$0xff]
        %v1475 = vld [vmem:[#allocation5 + $0xb0] sm:$0xff]
        %v1476 = vld [vmem:[#allocation5 + $0xb8] sm:$0xff]
        %v1477 = vld [vmem:[#allocation5 + $0xc0] sm:$0xff]
        %v1478 = vld [vmem:[#allocation5 + $0xc8] sm:$0xff]
        %v1479 = vld [vmem:[#allocation5 + $0xd0] sm:$0xff]
        %v1480 = vld [vmem:[#allocation5 + $0xd8] sm:$0xff]
        %v1481 = vld [vmem:[#allocation5 + $0xe0] sm:$0xff]
        %v1482 = vld [vmem:[#allocation5 + $0xe8] sm:$0xff]
        %v1483 = vld [vmem:[#allocation5 + $0xf0] sm:$0xff]
        %v1484 = vld [vmem:[#allocation5 + $0xf8] sm:$0xff]
        %v1485 = vpack.c.bf16 %v1422, %v1421
        %v1486 = vpack.c.bf16 %v1424, %v1423
        %v1487 = vpack.c.bf16 %v1426, %v1425
        %v1488 = vpack.c.bf16 %v1428, %v1427
        %v1489 = vpack.c.bf16 %v1430, %v1429
        %v1490 = vpack.c.bf16 %v1432, %v1431
        %v1491 = vpack.c.bf16 %v1434, %v1433
        %v1492 = vpack.c.bf16 %v1436, %v1435
        %v1493 = vpack.c.bf16 %v1438, %v1437
        %v1494 = vpack.c.bf16 %v1440, %v1439
        %v1495 = vpack.c.bf16 %v1442, %v1441
        %v1496 = vpack.c.bf16 %v1444, %v1443
        %v1497 = vpack.c.bf16 %v1446, %v1445
        %v1498 = vpack.c.bf16 %v1448, %v1447
        %v1499 = vpack.c.bf16 %v1450, %v1449
        %v1500 = vpack.c.bf16 %v1452, %v1451
        %v1533 = vunpack.c.l.b16 %v1453
        %v1534 = vunpack.c.h.b16 %v1453
        %v1535 = vunpack.c.l.b16 %v1454
        %v1536 = vunpack.c.h.b16 %v1454
        %v1537 = vunpack.c.l.b16 %v1455
        %v1538 = vunpack.c.h.b16 %v1455
        %v1539 = vunpack.c.l.b16 %v1456
        %v1540 = vunpack.c.h.b16 %v1456
        %v1541 = vunpack.c.l.b16 %v1457
        %v1542 = vunpack.c.h.b16 %v1457
        %v1543 = vunpack.c.l.b16 %v1458
        %v1544 = vunpack.c.h.b16 %v1458
        %v1545 = vunpack.c.l.b16 %v1459
        %v1546 = vunpack.c.h.b16 %v1459
        %v1547 = vunpack.c.l.b16 %v1460
        %v1548 = vunpack.c.h.b16 %v1460
        %v1549 = vunpack.c.l.b16 %v1461
        %v1550 = vunpack.c.h.b16 %v1461
        %v1551 = vunpack.c.l.b16 %v1462
        %v1552 = vunpack.c.h.b16 %v1462
        %v1553 = vunpack.c.l.b16 %v1463
        %v1554 = vunpack.c.h.b16 %v1463
        %v1555 = vunpack.c.l.b16 %v1464
        %v1556 = vunpack.c.h.b16 %v1464
        %v1557 = vunpack.c.l.b16 %v1465
        %v1558 = vunpack.c.h.b16 %v1465
        %v1559 = vunpack.c.l.b16 %v1466
        %v1560 = vunpack.c.h.b16 %v1466
        %v1561 = vunpack.c.l.b16 %v1467
        %v1562 = vunpack.c.h.b16 %v1467
        %v1563 = vunpack.c.l.b16 %v1468
        %v1564 = vunpack.c.h.b16 %v1468
        %v1565 = vunpack.c.l.b16 %v1469
        %v1566 = vunpack.c.h.b16 %v1469
        %v1567 = vunpack.c.l.b16 %v1470
        %v1568 = vunpack.c.h.b16 %v1470
        %v1569 = vunpack.c.l.b16 %v1471
        %v1570 = vunpack.c.h.b16 %v1471
        %v1571 = vunpack.c.l.b16 %v1472
        %v1572 = vunpack.c.h.b16 %v1472
        %v1573 = vunpack.c.l.b16 %v1473
        %v1574 = vunpack.c.h.b16 %v1473
        %v1575 = vunpack.c.l.b16 %v1474
        %v1576 = vunpack.c.h.b16 %v1474
        %v1577 = vunpack.c.l.b16 %v1475
        %v1578 = vunpack.c.h.b16 %v1475
        %v1579 = vunpack.c.l.b16 %v1476
        %v1580 = vunpack.c.h.b16 %v1476
        %v1581 = vunpack.c.l.b16 %v1477
        %v1582 = vunpack.c.h.b16 %v1477
        %v1583 = vunpack.c.l.b16 %v1478
        %v1584 = vunpack.c.h.b16 %v1478
        %v1585 = vunpack.c.l.b16 %v1479
        %v1586 = vunpack.c.h.b16 %v1479
        %v1587 = vunpack.c.l.b16 %v1480
        %v1588 = vunpack.c.h.b16 %v1480
        %v1589 = vunpack.c.l.b16 %v1481
        %v1590 = vunpack.c.h.b16 %v1481
        %v1591 = vunpack.c.l.b16 %v1482
        %v1592 = vunpack.c.h.b16 %v1482
        %v1593 = vunpack.c.l.b16 %v1483
        %v1594 = vunpack.c.h.b16 %v1483
        %v1595 = vunpack.c.l.b16 %v1484
        %v1596 = vunpack.c.h.b16 %v1484
        %v1597 = vpack.c.b16 %v1535, %v1533
        %v1598 = vpack.c.b16 %v1536, %v1534
        %v1599 = vpack.c.b16 %v1539, %v1537
        %v1600 = vpack.c.b16 %v1540, %v1538
        %v1601 = vpack.c.b16 %v1543, %v1541
        %v1602 = vpack.c.b16 %v1544, %v1542
        %v1603 = vpack.c.b16 %v1547, %v1545
        %v1604 = vpack.c.b16 %v1548, %v1546
        %v1605 = vpack.c.b16 %v1551, %v1549
        %v1606 = vpack.c.b16 %v1552, %v1550
        %v1607 = vpack.c.b16 %v1555, %v1553
        %v1608 = vpack.c.b16 %v1556, %v1554
        %v1609 = vpack.c.b16 %v1559, %v1557
        %v1610 = vpack.c.b16 %v1560, %v1558
        %v1611 = vpack.c.b16 %v1563, %v1561
        %v1612 = vpack.c.b16 %v1564, %v1562
        %v1613 = vpack.c.b16 %v1567, %v1565
        %v1614 = vpack.c.b16 %v1568, %v1566
        %v1615 = vpack.c.b16 %v1571, %v1569
        %v1616 = vpack.c.b16 %v1572, %v1570
        %v1617 = vpack.c.b16 %v1575, %v1573
        %v1618 = vpack.c.b16 %v1576, %v1574
        %v1619 = vpack.c.b16 %v1579, %v1577
        %v1620 = vpack.c.b16 %v1580, %v1578
        %v1621 = vpack.c.b16 %v1583, %v1581
        %v1622 = vpack.c.b16 %v1584, %v1582
        %v1623 = vpack.c.b16 %v1587, %v1585
        %v1624 = vpack.c.b16 %v1588, %v1586
        %v1625 = vpack.c.b16 %v1591, %v1589
        %v1626 = vpack.c.b16 %v1592, %v1590
        %v1627 = vpack.c.b16 %v1595, %v1593
        %v1628 = vpack.c.b16 %v1596, %v1594
        %1661 = vmatprep.subr.bf16.mxu0 0
        %1662 = vmatpush1.bf16.msra.mxu0 %v1485
        %1663 = vmatprep.subr.bf16.mxu0 0
        %1664 = vmatpush1.bf16.msra.mxu0 %v1486
        %1665 = vmatprep.subr.bf16.mxu0 0
        %1666 = vmatpush1.bf16.msra.mxu0 %v1487
        %1667 = vmatprep.subr.bf16.mxu0 0
        %1668 = vmatpush1.bf16.msra.mxu0 %v1488
        %1669 = vmatprep.subr.bf16.mxu0 0
        %1670 = vmatpush1.bf16.msra.mxu0 %v1489
        %1671 = vmatprep.subr.bf16.mxu0 0
        %1672 = vmatpush1.bf16.msra.mxu0 %v1490
        %1673 = vmatprep.subr.bf16.mxu0 0
        %1674 = vmatpush1.bf16.msra.mxu0 %v1491
        %1675 = vmatprep.subr.bf16.mxu0 0
        %1676 = vmatpush1.bf16.msra.mxu0 %v1492
        %1677 = vmatprep.subr.bf16.mxu0 0
        %1678 = vmatpush1.bf16.msra.mxu0 %v1493
        %1679 = vmatprep.subr.bf16.mxu0 0
        %1680 = vmatpush1.bf16.msra.mxu0 %v1494
        %1681 = vmatprep.subr.bf16.mxu0 0
        %1682 = vmatpush1.bf16.msra.mxu0 %v1495
        %1683 = vmatprep.subr.bf16.mxu0 0
        %1684 = vmatpush1.bf16.msra.mxu0 %v1496
        %1685 = vmatprep.subr.bf16.mxu0 0
        %1686 = vmatpush1.bf16.msra.mxu0 %v1497
        %1687 = vmatprep.subr.bf16.mxu0 0
        %1688 = vmatpush1.bf16.msra.mxu0 %v1498
        %1689 = vmatprep.subr.bf16.mxu0 0
        %1690 = vmatpush1.bf16.msra.mxu0 %v1499
        %1691 = vmatprep.subr.bf16.mxu0 0
        %1692 = vmatpush1.bf16.msra.mxu0 %v1500
        %1693 = vmatprep.mubr.bf16.mxu0 %v1598
        %1694 = vmatmul.mubr.bf16.gmra.mrb[0].mxu0 %v1597
        %v1695 = vpop.f32.mrb[0].mxu0
        %v1696 = vadd.f32 0.0, %v1695
        %v1697 = vpop.f32.mrb[0].mxu0
        %v1698 = vpop.f32.mrb[0].mxu0
        %v1699 = vadd.f32 0.0, %v1698
        %v1700 = vpop.f32.mrb[0].mxu0
        %1701 = vmatprep.mubr.bf16.mxu0 %v1600
        %1702 = vmatmul.mubr.bf16.gmra.mrb[0].mxu0 %v1599
        %v1703 = vpop.f32.mrb[0].mxu0
        %v1704 = vadd.f32 0.0, %v1703
        %v1705 = vpop.f32.mrb[0].mxu0
        %v1706 = vpop.f32.mrb[0].mxu0
        %v1707 = vadd.f32 0.0, %v1706
        %v1708 = vpop.f32.mrb[0].mxu0
        %1709 = vmatprep.mubr.bf16.mxu0 %v1602
        %1710 = vmatmul.mubr.bf16.gmra.mrb[0].mxu0 %v1601
        %v1711 = vpop.f32.mrb[0].mxu0
        %v1712 = vadd.f32 0.0, %v1711
        %v1713 = vpop.f32.mrb[0].mxu0
        %v1714 = vpop.f32.mrb[0].mxu0
        %v1715 = vadd.f32 0.0, %v1714
        %v1716 = vpop.f32.mrb[0].mxu0
        %1717 = vmatprep.mubr.bf16.mxu0 %v1604
        %1718 = vmatmul.mubr.bf16.gmra.mrb[0].mxu0 %v1603
        %v1719 = vpop.f32.mrb[0].mxu0
        %v1720 = vadd.f32 0.0, %v1719
        %v1721 = vpop.f32.mrb[0].mxu0
        %v1722 = vpop.f32.mrb[0].mxu0
        %v1723 = vadd.f32 0.0, %v1722
        %v1724 = vpop.f32.mrb[0].mxu0
        %1725 = vmatprep.mubr.bf16.mxu0 %v1606
        %1726 = vmatmul.mubr.bf16.gmra.mrb[0].mxu0 %v1605
        %v1727 = vpop.f32.mrb[0].mxu0
        %v1728 = vadd.f32 0.0, %v1727
        %v1729 = vpop.f32.mrb[0].mxu0
        %v1730 = vpop.f32.mrb[0].mxu0
        %v1731 = vadd.f32 0.0, %v1730
        %v1732 = vpop.f32.mrb[0].mxu0
        %1733 = vmatprep.mubr.bf16.mxu0 %v1608
        %1734 = vmatmul.mubr.bf16.gmra.mrb[0].mxu0 %v1607
        %v1735 = vpop.f32.mrb[0].mxu0
        %v1736 = vadd.f32 0.0, %v1735
        %v1737 = vpop.f32.mrb[0].mxu0
        %v1738 = vpop.f32.mrb[0].mxu0
        %v1739 = vadd.f32 0.0, %v1738
        %v1740 = vpop.f32.mrb[0].mxu0
        %1741 = vmatprep.mubr.bf16.mxu0 %v1610
        %1742 = vmatmul.mubr.bf16.gmra.mrb[0].mxu0 %v1609
        %v1743 = vpop.f32.mrb[0].mxu0
        %v1744 = vadd.f32 0.0, %v1743
        %v1745 = vpop.f32.mrb[0].mxu0
        %v1746 = vpop.f32.mrb[0].mxu0
        %v1747 = vadd.f32 0.0, %v1746
        %v1748 = vpop.f32.mrb[0].mxu0
        %1749 = vmatprep.mubr.bf16.mxu0 %v1612
        %1750 = vmatmul.mubr.bf16.gmra.mrb[0].mxu0 %v1611
        %v1751 = vpop.f32.mrb[0].mxu0
        %v1752 = vadd.f32 0.0, %v1751
        %v1753 = vpop.f32.mrb[0].mxu0
        %v1754 = vpop.f32.mrb[0].mxu0
        %v1755 = vadd.f32 0.0, %v1754
        %v1756 = vpop.f32.mrb[0].mxu0
        %1757 = vmatprep.mubr.bf16.mxu0 %v1614
        %1758 = vmatmul.mubr.bf16.gmra.mrb[0].mxu0 %v1613
        %v1759 = vpop.f32.mrb[0].mxu0
        %v1760 = vadd.f32 0.0, %v1759
        %v1761 = vpop.f32.mrb[0].mxu0
        %v1762 = vpop.f32.mrb[0].mxu0
        %v1763 = vadd.f32 0.0, %v1762
        %v1764 = vpop.f32.mrb[0].mxu0
        %1765 = vmatprep.mubr.bf16.mxu0 %v1616
        %1766 = vmatmul.mubr.bf16.gmra.mrb[0].mxu0 %v1615
        %v1767 = vpop.f32.mrb[0].mxu0
        %v1768 = vadd.f32 0.0, %v1767
        %v1769 = vpop.f32.mrb[0].mxu0
        %v1770 = vpop.f32.mrb[0].mxu0
        %v1771 = vadd.f32 0.0, %v1770
        %v1772 = vpop.f32.mrb[0].mxu0
        %1773 = vmatprep.mubr.bf16.mxu0 %v1618
        %1774 = vmatmul.mubr.bf16.gmra.mrb[0].mxu0 %v1617
        %v1775 = vpop.f32.mrb[0].mxu0
        %v1776 = vadd.f32 0.0, %v1775
        %v1777 = vpop.f32.mrb[0].mxu0
        %v1778 = vpop.f32.mrb[0].mxu0
        %v1779 = vadd.f32 0.0, %v1778
        %v1780 = vpop.f32.mrb[0].mxu0
        %1781 = vmatprep.mubr.bf16.mxu0 %v1620
        %1782 = vmatmul.mubr.bf16.gmra.mrb[0].mxu0 %v1619
        %v1783 = vpop.f32.mrb[0].mxu0
        %v1784 = vadd.f32 0.0, %v1783
        %v1785 = vpop.f32.mrb[0].mxu0
        %v1786 = vpop.f32.mrb[0].mxu0
        %v1787 = vadd.f32 0.0, %v1786
        %v1788 = vpop.f32.mrb[0].mxu0
        %1789 = vmatprep.mubr.bf16.mxu0 %v1622
        %1790 = vmatmul.mubr.bf16.gmra.mrb[0].mxu0 %v1621
        %v1791 = vpop.f32.mrb[0].mxu0
        %v1792 = vadd.f32 0.0, %v1791
        %v1793 = vpop.f32.mrb[0].mxu0
        %v1794 = vpop.f32.mrb[0].mxu0
        %v1795 = vadd.f32 0.0, %v1794
        %v1796 = vpop.f32.mrb[0].mxu0
        %1797 = vmatprep.mubr.bf16.mxu0 %v1624
        %1798 = vmatmul.mubr.bf16.gmra.mrb[0].mxu0 %v1623
        %v1799 = vpop.f32.mrb[0].mxu0
        %v1800 = vadd.f32 0.0, %v1799
        %v1801 = vpop.f32.mrb[0].mxu0
        %v1802 = vpop.f32.mrb[0].mxu0
        %v1803 = vadd.f32 0.0, %v1802
        %v1804 = vpop.f32.mrb[0].mxu0
        %1805 = vmatprep.mubr.bf16.mxu0 %v1626
        %1806 = vmatmul.mubr.bf16.gmra.mrb[0].mxu0 %v1625
        %v1807 = vpop.f32.mrb[0].mxu0
        %v1808 = vadd.f32 0.0, %v1807
        %v1809 = vpop.f32.mrb[0].mxu0
        %v1810 = vpop.f32.mrb[0].mxu0
        %v1811 = vadd.f32 0.0, %v1810
        %v1812 = vpop.f32.mrb[0].mxu0
        %1813 = vmatprep.mubr.bf16.mxu0 %v1628
        %1814 = vmatmul.mubr.bf16.gmra.mrb[0].mxu0 %v1627
        %v1815 = vpop.f32.mrb[0].mxu0
        %v1816 = vadd.f32 0.0, %v1815
        %v1817 = vpop.f32.mrb[0].mxu0
        %v1818 = vpop.f32.mrb[0].mxu0
        %v1819 = vadd.f32 0.0, %v1818
        %v1820 = vpop.f32.mrb[0].mxu0
        %1821 = vdwg.mxu0
        %v1822 = vld [vmem:[%s259] sm:$0xf]
        %v1823 = vld [vmem:[%s259 + $0x4] sm:$0xf]
        %v1824 = vld [vmem:[%s259 + $0x8] sm:$0xf]
        %v1825 = vld [vmem:[%s259 + $0xc] sm:$0xf]
        %v1826 = vld [vmem:[%s259 + $0x10] sm:$0xf]
        %v1827 = vld [vmem:[%s259 + $0x14] sm:$0xf]
        %v1828 = vld [vmem:[%s259 + $0x18] sm:$0xf]
        %v1829 = vld [vmem:[%s259 + $0x1c] sm:$0xf]
        %v1830 = vld [vmem:[%s259 + $0x20] sm:$0xf]
        %v1831 = vld [vmem:[%s259 + $0x24] sm:$0xf]
        %v1832 = vld [vmem:[%s259 + $0x28] sm:$0xf]
        %v1833 = vld [vmem:[%s259 + $0x2c] sm:$0xf]
        %v1834 = vld [vmem:[%s259 + $0x30] sm:$0xf]
        %v1835 = vld [vmem:[%s259 + $0x34] sm:$0xf]
        %v1836 = vld [vmem:[%s259 + $0x38] sm:$0xf]
        %v1837 = vld [vmem:[%s259 + $0x3c] sm:$0xf]
        %v1838 = vld [vmem:[%s259 + $0x40] sm:$0xf]
        %v1839 = vld [vmem:[%s259 + $0x44] sm:$0xf]
        %v1840 = vld [vmem:[%s259 + $0x48] sm:$0xf]
        %v1841 = vld [vmem:[%s259 + $0x4c] sm:$0xf]
        %v1842 = vld [vmem:[%s259 + $0x50] sm:$0xf]
        %v1843 = vld [vmem:[%s259 + $0x54] sm:$0xf]
        %v1844 = vld [vmem:[%s259 + $0x58] sm:$0xf]
        %v1845 = vld [vmem:[%s259 + $0x5c] sm:$0xf]
        %v1846 = vld [vmem:[%s259 + $0x60] sm:$0xf]
        %v1847 = vld [vmem:[%s259 + $0x64] sm:$0xf]
        %v1848 = vld [vmem:[%s259 + $0x68] sm:$0xf]
        %v1849 = vld [vmem:[%s259 + $0x6c] sm:$0xf]
        %v1850 = vld [vmem:[%s259 + $0x70] sm:$0xf]
        %v1851 = vld [vmem:[%s259 + $0x74] sm:$0xf]
        %v1852 = vld [vmem:[%s259 + $0x78] sm:$0xf]
        %v1853 = vld [vmem:[%s259 + $0x7c] sm:$0xf]
        %v1854 = vunpack.c.l.bf16 %v1822
        %v1855 = vunpack.c.l.bf16 %v1823
        %v1856 = vunpack.c.l.bf16 %v1824
        %v1857 = vunpack.c.l.bf16 %v1825
        %v1858 = vunpack.c.l.bf16 %v1826
        %v1859 = vunpack.c.l.bf16 %v1827
        %v1860 = vunpack.c.l.bf16 %v1828
        %v1861 = vunpack.c.l.bf16 %v1829
        %v1862 = vunpack.c.l.bf16 %v1830
        %v1863 = vunpack.c.l.bf16 %v1831
        %v1864 = vunpack.c.l.bf16 %v1832
        %v1865 = vunpack.c.l.bf16 %v1833
        %v1866 = vunpack.c.l.bf16 %v1834
        %v1867 = vunpack.c.l.bf16 %v1835
        %v1868 = vunpack.c.l.bf16 %v1836
        %v1869 = vunpack.c.l.bf16 %v1837
        %v1870 = vunpack.c.l.bf16 %v1838
        %v1871 = vunpack.c.l.bf16 %v1839
        %v1872 = vunpack.c.l.bf16 %v1840
        %v1873 = vunpack.c.l.bf16 %v1841
        %v1874 = vunpack.c.l.bf16 %v1842
        %v1875 = vunpack.c.l.bf16 %v1843
        %v1876 = vunpack.c.l.bf16 %v1844
        %v1877 = vunpack.c.l.bf16 %v1845
        %v1878 = vunpack.c.l.bf16 %v1846
        %v1879 = vunpack.c.l.bf16 %v1847
        %v1880 = vunpack.c.l.bf16 %v1848
        %v1881 = vunpack.c.l.bf16 %v1849
        %v1882 = vunpack.c.l.bf16 %v1850
        %v1883 = vunpack.c.l.bf16 %v1851
        %v1884 = vunpack.c.l.bf16 %v1852
        %v1885 = vunpack.c.l.bf16 %v1853
        %v1886 = vmul.f32 %v1696, %v1854
        %v1887 = vmul.f32 %v1699, %v1855
        %v1888 = vmul.f32 %v1704, %v1856
        %v1889 = vmul.f32 %v1707, %v1857
        %v1890 = vmul.f32 %v1712, %v1858
        %v1891 = vmul.f32 %v1715, %v1859
        %v1892 = vmul.f32 %v1720, %v1860
        %v1893 = vmul.f32 %v1723, %v1861
        %v1894 = vmul.f32 %v1728, %v1862
        %v1895 = vmul.f32 %v1731, %v1863
        %v1896 = vmul.f32 %v1736, %v1864
        %v1897 = vmul.f32 %v1739, %v1865
        %v1898 = vmul.f32 %v1744, %v1866
        %v1899 = vmul.f32 %v1747, %v1867
        %v1900 = vmul.f32 %v1752, %v1868
        %v1901 = vmul.f32 %v1755, %v1869
        %v1902 = vmul.f32 %v1760, %v1870
        %v1903 = vmul.f32 %v1763, %v1871
        %v1904 = vmul.f32 %v1768, %v1872
        %v1905 = vmul.f32 %v1771, %v1873
        %v1906 = vmul.f32 %v1776, %v1874
        %v1907 = vmul.f32 %v1779, %v1875
        %v1908 = vmul.f32 %v1784, %v1876
        %v1909 = vmul.f32 %v1787, %v1877
        %v1910 = vmul.f32 %v1792, %v1878
        %v1911 = vmul.f32 %v1795, %v1879
        %v1912 = vmul.f32 %v1800, %v1880
        %v1913 = vmul.f32 %v1803, %v1881
        %v1914 = vmul.f32 %v1808, %v1882
        %v1915 = vmul.f32 %v1811, %v1883
        %v1916 = vmul.f32 %v1816, %v1884
        %v1917 = vmul.f32 %v1819, %v1885
        %v1918 = vlaneseq
        %v1919 = vshrl.u32 %v1918, 7
        %v1920 = vsub.s32 2, %v1919
        %v1921 = vrot.slane %v307, %v1920
        %v1922 = vmul.f32 %v1696, %v1921
        %v1923 = vmul.f32 %v1699, %v1921
        %v1924 = vmul.f32 %v1704, %v1921
        %v1925 = vmul.f32 %v1707, %v1921
        %v1926 = vmul.f32 %v1712, %v1921
        %v1927 = vmul.f32 %v1715, %v1921
        %v1928 = vmul.f32 %v1720, %v1921
        %v1929 = vmul.f32 %v1723, %v1921
        %v1930 = vmul.f32 %v1728, %v1921
        %v1931 = vmul.f32 %v1731, %v1921
        %v1932 = vmul.f32 %v1736, %v1921
        %v1933 = vmul.f32 %v1739, %v1921
        %v1934 = vmul.f32 %v1744, %v1921
        %v1935 = vmul.f32 %v1747, %v1921
        %v1936 = vmul.f32 %v1752, %v1921
        %v1937 = vmul.f32 %v1755, %v1921
        %v1938 = vmul.f32 %v1760, %v1921
        %v1939 = vmul.f32 %v1763, %v1921
        %v1940 = vmul.f32 %v1768, %v1921
        %v1941 = vmul.f32 %v1771, %v1921
        %v1942 = vmul.f32 %v1776, %v1921
        %v1943 = vmul.f32 %v1779, %v1921
        %v1944 = vmul.f32 %v1784, %v1921
        %v1945 = vmul.f32 %v1787, %v1921
        %v1946 = vmul.f32 %v1792, %v1921
        %v1947 = vmul.f32 %v1795, %v1921
        %v1948 = vmul.f32 %v1800, %v1921
        %v1949 = vmul.f32 %v1803, %v1921
        %v1950 = vmul.f32 %v1808, %v1921
        %v1951 = vmul.f32 %v1811, %v1921
        %v1952 = vmul.f32 %v1816, %v1921
        %v1953 = vmul.f32 %v1819, %v1921
        %v1954 = vlaneseq
        %v1955 = vshrl.u32 %v1954, 7
        %v1956 = vsub.s32 3, %v1955
        %v1957 = vrot.slane %v307, %v1956
        %v1958 = vsub.f32 %v1957, %v1922
        %v1959 = vsub.f32 %v1957, %v1923
        %v1960 = vsub.f32 %v1957, %v1924
        %v1961 = vsub.f32 %v1957, %v1925
        %v1962 = vsub.f32 %v1957, %v1926
        %v1963 = vsub.f32 %v1957, %v1927
        %v1964 = vsub.f32 %v1957, %v1928
        %v1965 = vsub.f32 %v1957, %v1929
        %v1966 = vsub.f32 %v1957, %v1930
        %v1967 = vsub.f32 %v1957, %v1931
        %v1968 = vsub.f32 %v1957, %v1932
        %v1969 = vsub.f32 %v1957, %v1933
        %v1970 = vsub.f32 %v1957, %v1934
        %v1971 = vsub.f32 %v1957, %v1935
        %v1972 = vsub.f32 %v1957, %v1936
        %v1973 = vsub.f32 %v1957, %v1937
        %v1974 = vsub.f32 %v1957, %v1938
        %v1975 = vsub.f32 %v1957, %v1939
        %v1976 = vsub.f32 %v1957, %v1940
        %v1977 = vsub.f32 %v1957, %v1941
        %v1978 = vsub.f32 %v1957, %v1942
        %v1979 = vsub.f32 %v1957, %v1943
        %v1980 = vsub.f32 %v1957, %v1944
        %v1981 = vsub.f32 %v1957, %v1945
        %v1982 = vsub.f32 %v1957, %v1946
        %v1983 = vsub.f32 %v1957, %v1947
        %v1984 = vsub.f32 %v1957, %v1948
        %v1985 = vsub.f32 %v1957, %v1949
        %v1986 = vsub.f32 %v1957, %v1950
        %v1987 = vsub.f32 %v1957, %v1951
        %v1988 = vsub.f32 %v1957, %v1952
        %v1989 = vsub.f32 %v1957, %v1953
        %v1990 = vadd.f32 %v1886, %v1958
        %v1991 = vadd.f32 %v1887, %v1959
        %v1992 = vadd.f32 %v1888, %v1960
        %v1993 = vadd.f32 %v1889, %v1961
        %v1994 = vadd.f32 %v1890, %v1962
        %v1995 = vadd.f32 %v1891, %v1963
        %v1996 = vadd.f32 %v1892, %v1964
        %v1997 = vadd.f32 %v1893, %v1965
        %v1998 = vadd.f32 %v1894, %v1966
        %v1999 = vadd.f32 %v1895, %v1967
        %v2000 = vadd.f32 %v1896, %v1968
        %v2001 = vadd.f32 %v1897, %v1969
        %v2002 = vadd.f32 %v1898, %v1970
        %v2003 = vadd.f32 %v1899, %v1971
        %v2004 = vadd.f32 %v1900, %v1972
        %v2005 = vadd.f32 %v1901, %v1973
        %v2006 = vadd.f32 %v1902, %v1974
        %v2007 = vadd.f32 %v1903, %v1975
        %v2008 = vadd.f32 %v1904, %v1976
        %v2009 = vadd.f32 %v1905, %v1977
        %v2010 = vadd.f32 %v1906, %v1978
        %v2011 = vadd.f32 %v1907, %v1979
        %v2012 = vadd.f32 %v1908, %v1980
        %v2013 = vadd.f32 %v1909, %v1981
        %v2014 = vadd.f32 %v1910, %v1982
        %v2015 = vadd.f32 %v1911, %v1983
        %v2016 = vadd.f32 %v1912, %v1984
        %v2017 = vadd.f32 %v1913, %v1985
        %v2018 = vadd.f32 %v1914, %v1986
        %v2019 = vadd.f32 %v1915, %v1987
        %v2020 = vadd.f32 %v1916, %v1988
        %v2021 = vadd.f32 %v1917, %v1989
        %2022 = vst [vmem:[%s297] sm:$0xff] %v1990
        %2023 = vst [vmem:[%s297 + $0x8] sm:$0xff] %v1991
        %2024 = vst [vmem:[%s297 + $0x10] sm:$0xff] %v1992
        %2025 = vst [vmem:[%s297 + $0x18] sm:$0xff] %v1993
        %2026 = vst [vmem:[%s297 + $0x20] sm:$0xff] %v1994
        %2027 = vst [vmem:[%s297 + $0x28] sm:$0xff] %v1995
        %2028 = vst [vmem:[%s297 + $0x30] sm:$0xff] %v1996
        %2029 = vst [vmem:[%s297 + $0x38] sm:$0xff] %v1997
        %2030 = vst [vmem:[%s297 + $0x40] sm:$0xff] %v1998
        %2031 = vst [vmem:[%s297 + $0x48] sm:$0xff] %v1999
        %2032 = vst [vmem:[%s297 + $0x50] sm:$0xff] %v2000
        %2033 = vst [vmem:[%s297 + $0x58] sm:$0xff] %v2001
        %2034 = vst [vmem:[%s297 + $0x60] sm:$0xff] %v2002
        %2035 = vst [vmem:[%s297 + $0x68] sm:$0xff] %v2003
        %2036 = vst [vmem:[%s297 + $0x70] sm:$0xff] %v2004
        %2037 = vst [vmem:[%s297 + $0x78] sm:$0xff] %v2005
        %2038 = vst [vmem:[%s297 + $0x80] sm:$0xff] %v2006
        %2039 = vst [vmem:[%s297 + $0x88] sm:$0xff] %v2007
        %2040 = vst [vmem:[%s297 + $0x90] sm:$0xff] %v2008
        %2041 = vst [vmem:[%s297 + $0x98] sm:$0xff] %v2009
        %2042 = vst [vmem:[%s297 + $0xa0] sm:$0xff] %v2010
        %2043 = vst [vmem:[%s297 + $0xa8] sm:$0xff] %v2011
        %2044 = vst [vmem:[%s297 + $0xb0] sm:$0xff] %v2012
        %2045 = vst [vmem:[%s297 + $0xb8] sm:$0xff] %v2013
        %2046 = vst [vmem:[%s297 + $0xc0] sm:$0xff] %v2014
        %2047 = vst [vmem:[%s297 + $0xc8] sm:$0xff] %v2015
        %2048 = vst [vmem:[%s297 + $0xd0] sm:$0xff] %v2016
        %2049 = vst [vmem:[%s297 + $0xd8] sm:$0xff] %v2017
        %2050 = vst [vmem:[%s297 + $0xe0] sm:$0xff] %v2018
        %2051 = vst [vmem:[%s297 + $0xe8] sm:$0xff] %v2019
        %2052 = vst [vmem:[%s297 + $0xf0] sm:$0xff] %v2020
        %2053 = vst [vmem:[%s297 + $0xf8] sm:$0xff] %v2021
        %s2054 = sand.u32 %s164, 1
        %s2055 = scalar_lea.sflag [#allocation4], %s2054
        %s2056 = sand.u32 %s164, 1
        %s2057 = smul.addr %s2056, 256
        %s2058 = scalar_lea.vmem [#allocation7], %s2057
        // Predicated region
        $region49: #{tpu_custom_call.1} parent=39 // pred_check
          %p2059 = pneg %p174
        $region50: #{tpu_custom_call.1} parent=39 // pred_check_branch
          %2061 = sbr.rel (%p2059) target = $region52
        $region51: #{tpu_custom_call.1} parent=39 // pred_region
          %s2063 = ssub.s32 4096, 4096
          %2064 = vsyncadd %s2055, %s2063
          %s2065 = smul.addr %s27, 64
          %s2066 = sadd.s32 %s28, %s2065
          %s2067 = smul.addr %s2066, 128
          %s2068 = scalar_lea.hbm %s5, %s2067
          %s2069 = sshll.u32 %s2058, 4
          %s2070 = int_to_ptr.vmem [resolvable:$true] %s2069
          %2075 = dma.vmem_to_hbm [thread:$0]  %s2070, 4096, %s2068, %s2055, 128, 256, 8
        $region52: #{tpu_custom_call.1} parent=39 // pred_fallthru
          _
      $region40: #{tpu_custom_call.1} parent=5 // pred_fallthru
        _
      %p2076 = scmp.le.s32.totalorder 2, %s18
      // Predicated region
      $region53: #{tpu_custom_call.1} parent=5 // pred_check
        %p2077 = pneg %p2076
      $region54: #{tpu_custom_call.1} parent=5 // pred_check_branch
        %2079 = sbr.rel (%p2077) target = $region56
      $region55: #{tpu_custom_call.1} parent=5 // pred_region
        %s2080 = ssub.s32 %s18, 2
        // Predicated region
        $region57: #{tpu_custom_call.1} parent=55 // pred_check
          %p2081 = pneg %p180
        $region58: #{tpu_custom_call.1} parent=55 // pred_check_branch
          %2083 = sbr.rel (%p2081) target = $region60
        $region59: #{tpu_custom_call.1} parent=55 // pred_region
          %s2084 = sand.u32 %s165, 1
          %s2085 = scalar_lea.sflag [#allocation4], %s2084
          %s2086 = sand.u32 %s165, 1
          %s2087 = smul.addr %s2086, 256
          %s2088 = scalar_lea.vmem [#allocation7], %s2087
          %2089 = dma.done %s2085, 4096
        $region60: #{tpu_custom_call.1} parent=55 // pred_fallthru
          _
      $region56: #{tpu_custom_call.1} parent=5 // pred_fallthru
        _
    $region6: #{tpu_custom_call.1} parent=1 // loop_footer
      %s22 = sadd.s32 1, %s18
    $region7: #{tpu_custom_call.1} parent=1 // loop_footer_branch
      %17 = sbr.rel target = $region3
    $region8: #{tpu_custom_call.1} parent=1 // loop_exit
      _
    %2090 = vsyncpa [#allocation3], 1
    %s2091 = scalar_lea.sflag [#allocation3], 1
    %2092 = vsyncpa %s2091, 1
    %2093 = vsyncpa [#allocation6], 1
    %2094 = vsyncpa [#allocation4], 1
    %s2095 = scalar_lea.sflag [#allocation4], 1
    %2096 = vsyncpa %s2095, 1

</llo_original>
